<compile_context>
chip_gen: v7x
topology: tpu7x:2x2x1
jax: 0.10.0
libtpu: 0.0.40
codegen_flags: <defaults>
</compile_context>

<pallas_src>
import functools

import jax
import jax.numpy as jnp
from jax import lax
from jax.experimental import pallas as pl
from jax.experimental.pallas import tpu as pltpu
from jax.scipy.linalg import block_diag


# ---------------------------------------------------------------------------
# Kernel: entire ShuffleNetV1UnitB forward for a block of Nb batch elements.
# Layout: (Nb, channels, H*W) -- channels on sublanes, flattened spatial on lanes.
# ---------------------------------------------------------------------------
def unit_b_kernel(x_ref, w1_ref, w5_ref, b_ref, poolw_ref, dww_ref, o_ref,
                  *, H, W, K):
    Cin = x_ref.shape[1]
    Cb = w1_ref.shape[0]
    Cout = w5_ref.shape[0]
    HW = x_ref.shape[2]

    x = x_ref[...].astype(jnp.float32)                 # (Nb, Cin, HW)
    w1 = w1_ref[...]                                   # (Cb, Cin)  shuffle+BN2 folded
    w5 = w5_ref[...]                                   # (Cout, Cb) BN6 folded

    # group_conv1 (1x1, densified block-diagonal) + bias + BN2 + ReLU + shuffle
    # (all folded into w1/b): depth-Cin f32 VPU broadcast-MACs (MXU not worth it
    # at contraction depth 4; keeps full f32 precision).
    y = w1[:, 0:1] * x[:, 0:1, :]
    for k in range(1, Cin):
        y = y + w1[:, k:k + 1] * x[:, k:k + 1, :]
    y = jnp.maximum(y + b_ref[0:Cb], 0.0)              # (Nb, Cb, HW)

    # One KxK stencil pass per branch:
    #   pool -> avg_pool2d(x, K, stride=1, 'same') shortcut
    #   dwo  -> depthwise_conv3(y) with BN4 scale folded in
    # Spatial shifts = lane rotations (XLU); the 'same' zero-padding validity mask is
    # pre-baked into the per-lane weight tables, so each tap is just mul + add.
    pool = None
    dwo = None
    for t in range(K * K):
        dh = t // K - K // 2
        dw = t % K - K // 2
        s = dh * W + dw
        xs = x if s == 0 else pltpu.roll(x, (-s) % HW, axis=2)
        ys = y if s == 0 else pltpu.roll(y, (-s) % HW, axis=2)
        pt = poolw_ref[t] * xs                         # (1,HW)  * (Nb,Cin,HW)
        dt = dww_ref[t] * ys                           # (Cb,HW) * (Nb,Cb,HW)
        pool = pt if pool is None else pool + pt
        dwo = dt if dwo is None else dwo + dt

    # group_conv5 (1x1, dense block-diagonal; BN6 + depthwise bias/BN4 shift folded
    # into w5/b5): depth-Cb f32 VPU broadcast-MACs.
    z = w5[:, 0:1] * dwo[:, 0:1, :]
    for k in range(1, Cb):
        z = z + w5[:, k:k + 1] * dwo[:, k:k + 1, :]
    z = z + b_ref[Cb:Cb + Cout]                        # (Nb, Cout, HW)

    # Fused concat([avg_pool(x), branch], channel axis) + final ReLU:
    # store the two halves directly (no in-kernel sublane concat).
    o_ref[:, 0:Cin, :] = jnp.maximum(pool, 0.0).astype(o_ref.dtype)
    o_ref[:, Cin:Cin + Cout, :] = jnp.maximum(z, 0.0).astype(o_ref.dtype)


# ---------------------------------------------------------------------------
# Wrapper: PyTorch-compatible NCHW in / NCHW out (only free reshapes outside).
# ---------------------------------------------------------------------------
def _pick_nb(N, cap):
    """Largest divisor of N that fits the VMEM cap and leaves >=2 grid steps
    whenever N >= 2 (so both v7x TensorCores get a block)."""
    hi = min(cap, N if N < 2 else max(1, N // 2))
    nb = 1
    for d in range(1, hi + 1):
        if N % d == 0:
            nb = d
    return nb


def shufflenet_v1_unit_b(x_nchw, fp, *, K, nb_cap=32):
    N, Cin, H, W = x_nchw.shape
    Cb = fp["w1"].shape[0]
    Cout = fp["w5"].shape[0]
    Ctot = Cin + Cout
    HW = H * W

    Nb = _pick_nb(N, nb_cap)
    G = N // Nb

    x_flat = x_nchw.reshape(N, Cin, HW)        # contiguous reshape, no transpose

    kern = functools.partial(unit_b_kernel, H=H, W=W, K=K)
    out_flat = pl.pallas_call(
        kern,
        out_shape=jax.ShapeDtypeStruct((N, Ctot, HW), x_nchw.dtype),
        grid_spec=pltpu.PrefetchScalarGridSpec(
            num_scalar_prefetch=0,
            grid=(G,),                          # Nb batch elements per grid step
            in_specs=[
                pl.BlockSpec((Nb, Cin, HW), lambda g: (g, 0, 0)),        # x
                pl.BlockSpec((Cb, Cin), lambda g: (0, 0)),               # w1 (folded)
                pl.BlockSpec((Cout, Cb), lambda g: (0, 0)),              # w5 (folded)
                pl.BlockSpec((Cb + Cout, 1), lambda g: (0, 0)),          # b1|b5 merged
                pl.BlockSpec((K * K, 1, HW), lambda g: (0, 0, 0)),       # pool taps
                pl.BlockSpec((K * K, Cb, HW), lambda g: (0, 0, 0)),      # dw taps
            ],
            out_specs=pl.BlockSpec((Nb, Ctot, HW), lambda g: (g, 0, 0)),
        ),
        compiler_params=pltpu.CompilerParams(dimension_semantics=("parallel",)),
    )(x_flat, fp["w1"], fp["w5"], fp["b_all"], fp["poolw"], fp["dww"])

    return out_flat.reshape(N, Ctot, H, W)


# ---------------------------------------------------------------------------
# Parameters (PyTorch layout) and folding into the kernel's layout.
# ---------------------------------------------------------------------------
def make_params(key, in_channels, out_channels, K, groups, branch):
    Cout = out_channels - in_channels
    Cb = Cout // 4 if branch == 1 else Cout // 2
    ks = jax.random.split(key, 9)

    def bn(k, C):
        k1, k2, k3, k4 = jax.random.split(k, 4)
        return dict(
            gamma=1.0 + 0.1 * jax.random.normal(k1, (C,), jnp.float32),
            beta=0.1 * jax.random.normal(k2, (C,), jnp.float32),
            mean=0.1 * jax.random.normal(k3, (C,), jnp.float32),
            var=jnp.abs(jax.random.normal(k4, (C,), jnp.float32)) + 0.5,
        )

    return dict(
        w1=0.5 * jax.random.normal(ks[0], (Cb, in_channels // groups), jnp.float32),
        b1=0.1 * jax.random.normal(ks[1], (Cb,), jnp.float32),
        wdw=0.5 * jax.random.normal(ks[2], (Cb, K, K), jnp.float32),
        bdw=0.1 * jax.random.normal(ks[3], (Cb,), jnp.float32),
        w5=0.5 * jax.random.normal(ks[4], (Cout, Cb // groups), jnp.float32),
        b5=0.1 * jax.random.normal(ks[5], (Cout,), jnp.float32),
        bn2=bn(ks[6], Cb), bn4=bn(ks[7], Cb), bn6=bn(ks[8], Cout),
    )


def fold_params(p, in_channels, groups, K, H, W, eps=1e-5):
    """Fold conv biases + eval-mode BN into weights/biases, densify the grouped 1x1
    convs as block-diagonal matrices, bake the channel_shuffle into conv1's rows,
    fold the depthwise bias through conv5, and build per-lane stencil tables with the
    'same'-padding validity masks pre-applied."""
    Cb = p["w1"].shape[0]
    Cout = p["w5"].shape[0]
    g = groups
    HW = H * W

    def bn_scale_shift(bn):
        s = bn["gamma"] / jnp.sqrt(bn["var"] + eps)
        return s, bn["beta"] - bn["mean"] * s

    s2, t2 = bn_scale_shift(p["bn2"])
    s4, t4 = bn_scale_shift(p["bn4"])
    s6, t6 = bn_scale_shift(p["bn6"])

    # group_conv1 -> dense block-diagonal (Cb, Cin); BN2 + channel_shuffle folded.
    opg = Cb // g
    w1d = block_diag(*[p["w1"][i * opg:(i + 1) * opg] for i in range(g)])
    w1d = w1d * s2[:, None]
    b1d = s2 * p["b1"] + t2
    invperm = jnp.array([(d % g) * (Cb // g) + d // g for d in range(Cb)])
    w1_eff = w1d[invperm]
    b1_eff = b1d[invperm]

    # group_conv5 -> dense block-diagonal (Cout, Cb); BN6 folded; the depthwise bias
    # and BN4 shift commute through conv5 (no nonlinearity between) -> fold into b5.
    opg5 = Cout // g
    w5d = block_diag(*[p["w5"][i * opg5:(i + 1) * opg5] for i in range(g)])
    w5_eff = w5d * s6[:, None]
    bdw_shift = s4 * p["bdw"] + t4
    b5_eff = w5_eff @ bdw_shift + s6 * p["b5"] + t6

    b_all = jnp.concatenate([b1_eff, b5_eff])[:, None]            # (Cb+Cout, 1)

    # Per-lane stencil tables, 'same'-padding mask baked in.
    #   poolw: avg_pool2d weights (count_include_pad=True -> 1/K^2 where in-image)
    #   dww  : depthwise weights with BN4 scale folded, zero where tap out of image
    ll = jnp.arange(HW)
    hh, ww = ll // W, ll % W
    dw_scaled = p["wdw"] * s4[:, None, None]
    pool_rows, dw_rows = [], []
    for t in range(K * K):
        dh = t // K - K // 2
        dw = t % K - K // 2
        valid = ((hh + dh >= 0) & (hh + dh < H) &
                 (ww + dw >= 0) & (ww + dw < W)).astype(jnp.float32)   # (HW,)
        pool_rows.append(valid / float(K * K))
        dw_rows.append(dw_scaled[:, t // K, t % K][:, None] * valid[None, :])
    poolw = jnp.stack(pool_rows)[:, None, :]                      # (K*K, 1, HW)
    dww = jnp.stack(dw_rows)                                      # (K*K, Cb, HW)

    return dict(w1=w1_eff, w5=w5_eff, b_all=b_all, poolw=poolw, dww=dww)


# ---------------------------------------------------------------------------
# Pure-JAX reference mirroring the PyTorch eval-mode forward (NCHW).
# ---------------------------------------------------------------------------
def ref_forward(x, p, groups, K, eps=1e-5):
    N, Cin, H, W = x.shape
    Cb = p["w1"].shape[0]
    dn = ("NCHW", "OIHW", "NCHW")
    hi = lax.Precision.HIGHEST

    def bn(t, b):
        return ((t - b["mean"][None, :, None, None])
                / jnp.sqrt(b["var"][None, :, None, None] + eps)
                * b["gamma"][None, :, None, None] + b["beta"][None, :, None, None])

    y = lax.conv_general_dilated(x, p["w1"][:, :, None, None], (1, 1), "VALID",
                                 feature_group_count=groups, dimension_numbers=dn,
                                 precision=hi) + p["b1"][None, :, None, None]
    y = jax.nn.relu(bn(y, p["bn2"]))
    # channel_shuffle(groups)
    y = y.reshape(N, groups, Cb // groups, H, W).transpose(0, 2, 1, 3, 4)
    y = y.reshape(N, Cb, H, W)
    # depthwise KxK conv, padding='same'
    y = lax.conv_general_dilated(y, p["wdw"][:, None, :, :], (1, 1), "SAME",
                                 feature_group_count=Cb, dimension_numbers=dn,
                                 precision=hi) + p["bdw"][None, :, None, None]
    y = bn(y, p["bn4"])
    z = lax.conv_general_dilated(y, p["w5"][:, :, None, None], (1, 1), "VALID",
                                 feature_group_count=groups, dimension_numbers=dn,
                                 precision=hi) + p["b5"][None, :, None, None]
    z = bn(z, p["bn6"])
    # shortcut: avg_pool2d(x, K, stride=1, padding=(K-1)//2), count_include_pad=True
    pad = (K - 1) // 2
    pooled = lax.reduce_window(x, 0.0, lax.add, (1, 1, K, K), (1, 1, 1, 1),
                               ((0, 0), (0, 0), (pad, pad), (pad, pad))) / float(K * K)
    return jax.nn.relu(jnp.concatenate([pooled, z], axis=1))


if __name__ == "__main__":
    # ShuffleNetV1UnitB(in_channels=4, out_channels=12, kernel=(3,3), groups=2, branch=2)
    #   -> bottleneck = (12-4)//2 = 4, branch output = 8, final channels = 4+8 = 12.
    in_channels, out_channels, K, groups, branch = 4, 12, 3, 2, 2
    N, H, W = 4, 16, 16          # N=4 -> Nb=2 per grid step, grid=(2,) (both TCs fed)

    key = jax.random.PRNGKey(0)
    kx, kp = jax.random.split(key)
    x = jax.random.normal(kx, (N, in_channels, H, W), jnp.float32)

    p = make_params(kp, in_channels, out_channels, K, groups, branch)
    fp = fold_params(p, in_channels, groups, K, H, W)

    out = shufflenet_v1_unit_b(x, fp, K=K)
    out = jax.block_until_ready(out)

    expected = ref_forward(x, p, groups, K)
    assert out.shape == (N, out_channels, H, W), out.shape
    err = float(jnp.max(jnp.abs(out - expected)))
    assert jnp.allclose(out, expected, rtol=1e-3, atol=1e-3), err
    print("KERNEL_OK")
</pallas_src>

<mosaic_0001>
module attributes {stable_mosaic.version = 11 : i64} {
  func.func @unit_b_kernel(%arg0: i32, %arg1: memref<2x4x256xf32, #tpu.memory_space<vmem>>, %arg2: memref<4x4xf32, #tpu.memory_space<vmem>>, %arg3: memref<8x4xf32, #tpu.memory_space<vmem>>, %arg4: memref<12x1xf32, #tpu.memory_space<vmem>>, %arg5: memref<9x1x256xf32, #tpu.memory_space<vmem>>, %arg6: memref<9x4x256xf32, #tpu.memory_space<vmem>>, %arg7: memref<2x12x256xf32, #tpu.memory_space<vmem>>) attributes {dimension_semantics = [#tpu.dimension_semantics<parallel>], iteration_bounds = array<i64: 2>, scalar_prefetch = 0 : i64, scratch_operands = 0 : i64, tpu.core_type = #tpu.core_type<tc>, window_params = [{transform_indices = @transform_0, window_bounds = array<i64: 2, 4, 256>}, {pipeline_mode = #tpu.pipeline_mode<synchronous>, transform_indices = @transform_1, window_bounds = array<i64: 4, 4>}, {pipeline_mode = #tpu.pipeline_mode<synchronous>, transform_indices = @transform_2, window_bounds = array<i64: 8, 4>}, {pipeline_mode = #tpu.pipeline_mode<synchronous>, transform_indices = @transform_3, window_bounds = array<i64: 12, 1>}, {pipeline_mode = #tpu.pipeline_mode<synchronous>, transform_indices = @transform_4, window_bounds = array<i64: 9, 1, 256>}, {pipeline_mode = #tpu.pipeline_mode<synchronous>, transform_indices = @transform_5, window_bounds = array<i64: 9, 4, 256>}, {transform_indices = @transform_6, window_bounds = array<i64: 2, 12, 256>}]} {
    %c0 = arith.constant 0 : index
    %c0_0 = arith.constant 0 : index
    %c0_1 = arith.constant 0 : index
    %0 = vector.load %arg1[%c0, %c0_0, %c0_1] : memref<2x4x256xf32, #tpu.memory_space<vmem>>, vector<2x4x256xf32>
    %c0_2 = arith.constant 0 : index
    %c0_3 = arith.constant 0 : index
    %1 = vector.load %arg2[%c0_2, %c0_3] : memref<4x4xf32, #tpu.memory_space<vmem>>, vector<4x4xf32>
    %c0_4 = arith.constant 0 : index
    %c0_5 = arith.constant 0 : index
    %2 = vector.load %arg3[%c0_4, %c0_5] : memref<8x4xf32, #tpu.memory_space<vmem>>, vector<8x4xf32>
    %3 = vector.extract_strided_slice %1 {offsets = [0, 0], sizes = [4, 1], strides = [1, 1]} : vector<4x4xf32> to vector<4x1xf32>
    %4 = vector.extract_strided_slice %0 {offsets = [0, 0, 0], sizes = [2, 1, 256], strides = [1, 1, 1]} : vector<2x4x256xf32> to vector<2x1x256xf32>
    %5 = vector.shape_cast %3 : vector<4x1xf32> to vector<1x4x1xf32>
    %6 = vector.broadcast %5 : vector<1x4x1xf32> to vector<2x4x256xf32>
    %7 = vector.broadcast %4 : vector<2x1x256xf32> to vector<2x4x256xf32>
    %8 = arith.mulf %6, %7 : vector<2x4x256xf32>
    %9 = vector.extract_strided_slice %1 {offsets = [0, 1], sizes = [4, 1], strides = [1, 1]} : vector<4x4xf32> to vector<4x1xf32>
    %10 = vector.extract_strided_slice %0 {offsets = [0, 1, 0], sizes = [2, 1, 256], strides = [1, 1, 1]} : vector<2x4x256xf32> to vector<2x1x256xf32>
    %11 = vector.shape_cast %9 : vector<4x1xf32> to vector<1x4x1xf32>
    %12 = vector.broadcast %11 : vector<1x4x1xf32> to vector<2x4x256xf32>
    %13 = vector.broadcast %10 : vector<2x1x256xf32> to vector<2x4x256xf32>
    %14 = arith.mulf %12, %13 : vector<2x4x256xf32>
    %15 = arith.addf %8, %14 : vector<2x4x256xf32>
    %16 = vector.extract_strided_slice %1 {offsets = [0, 2], sizes = [4, 1], strides = [1, 1]} : vector<4x4xf32> to vector<4x1xf32>
    %17 = vector.extract_strided_slice %0 {offsets = [0, 2, 0], sizes = [2, 1, 256], strides = [1, 1, 1]} : vector<2x4x256xf32> to vector<2x1x256xf32>
    %18 = vector.shape_cast %16 : vector<4x1xf32> to vector<1x4x1xf32>
    %19 = vector.broadcast %18 : vector<1x4x1xf32> to vector<2x4x256xf32>
    %20 = vector.broadcast %17 : vector<2x1x256xf32> to vector<2x4x256xf32>
    %21 = arith.mulf %19, %20 : vector<2x4x256xf32>
    %22 = arith.addf %15, %21 : vector<2x4x256xf32>
    %23 = vector.extract_strided_slice %1 {offsets = [0, 3], sizes = [4, 1], strides = [1, 1]} : vector<4x4xf32> to vector<4x1xf32>
    %24 = vector.extract_strided_slice %0 {offsets = [0, 3, 0], sizes = [2, 1, 256], strides = [1, 1, 1]} : vector<2x4x256xf32> to vector<2x1x256xf32>
    %25 = vector.shape_cast %23 : vector<4x1xf32> to vector<1x4x1xf32>
    %26 = vector.broadcast %25 : vector<1x4x1xf32> to vector<2x4x256xf32>
    %27 = vector.broadcast %24 : vector<2x1x256xf32> to vector<2x4x256xf32>
    %28 = arith.mulf %26, %27 : vector<2x4x256xf32>
    %29 = arith.addf %22, %28 : vector<2x4x256xf32>
    %c0_6 = arith.constant 0 : index
    %c0_7 = arith.constant 0 : index
    %30 = vector.load %arg4[%c0_6, %c0_7] : memref<12x1xf32, #tpu.memory_space<vmem>>, vector<4x1xf32>
    %31 = vector.shape_cast %30 : vector<4x1xf32> to vector<1x4x1xf32>
    %32 = vector.broadcast %31 : vector<1x4x1xf32> to vector<2x4x256xf32>
    %33 = arith.addf %29, %32 : vector<2x4x256xf32>
    %cst = arith.constant 0.000000e+00 : f32
    %34 = vector.broadcast %cst : f32 to vector<2x4x256xf32>
    %35 = arith.maximumf %33, %34 : vector<2x4x256xf32>
    %c17_i32 = arith.constant 17 : i32
    %36 = tpu.dynamic_rotate %0 by %c17_i32 dim 2 : vector<2x4x256xf32>, i32 -> vector<2x4x256xf32>
    %c17_i32_8 = arith.constant 17 : i32
    %37 = tpu.dynamic_rotate %35 by %c17_i32_8 dim 2 : vector<2x4x256xf32>, i32 -> vector<2x4x256xf32>
    %c0_9 = arith.constant 0 : index
    %c0_10 = arith.constant 0 : index
    %c0_11 = arith.constant 0 : index
    %38 = vector.load %arg5[%c0_9, %c0_10, %c0_11] : memref<9x1x256xf32, #tpu.memory_space<vmem>>, vector<1x1x256xf32>
    %39 = vector.shape_cast %38 : vector<1x1x256xf32> to vector<1x256xf32>
    %40 = vector.shape_cast %39 : vector<1x256xf32> to vector<1x1x256xf32>
    %41 = vector.broadcast %40 : vector<1x1x256xf32> to vector<2x4x256xf32>
    %42 = arith.mulf %41, %36 : vector<2x4x256xf32>
    %c0_12 = arith.constant 0 : index
    %c0_13 = arith.constant 0 : index
    %c0_14 = arith.constant 0 : index
    %43 = vector.load %arg6[%c0_12, %c0_13, %c0_14] : memref<9x4x256xf32, #tpu.memory_space<vmem>>, vector<1x4x256xf32>
    %44 = vector.shape_cast %43 : vector<1x4x256xf32> to vector<4x256xf32>
    %45 = vector.shape_cast %44 : vector<4x256xf32> to vector<1x4x256xf32>
    %46 = vector.broadcast %45 : vector<1x4x256xf32> to vector<2x4x256xf32>
    %47 = arith.mulf %46, %37 : vector<2x4x256xf32>
    %c16_i32 = arith.constant 16 : i32
    %48 = tpu.dynamic_rotate %0 by %c16_i32 dim 2 : vector<2x4x256xf32>, i32 -> vector<2x4x256xf32>
    %c16_i32_15 = arith.constant 16 : i32
    %49 = tpu.dynamic_rotate %35 by %c16_i32_15 dim 2 : vector<2x4x256xf32>, i32 -> vector<2x4x256xf32>
    %c1 = arith.constant 1 : index
    %c0_16 = arith.constant 0 : index
    %c0_17 = arith.constant 0 : index
    %50 = vector.load %arg5[%c1, %c0_16, %c0_17] : memref<9x1x256xf32, #tpu.memory_space<vmem>>, vector<1x1x256xf32>
    %51 = vector.shape_cast %50 : vector<1x1x256xf32> to vector<1x256xf32>
    %52 = vector.shape_cast %51 : vector<1x256xf32> to vector<1x1x256xf32>
    %53 = vector.broadcast %52 : vector<1x1x256xf32> to vector<2x4x256xf32>
    %54 = arith.mulf %53, %48 : vector<2x4x256xf32>
    %c1_18 = arith.constant 1 : index
    %c0_19 = arith.constant 0 : index
    %c0_20 = arith.constant 0 : index
    %55 = vector.load %arg6[%c1_18, %c0_19, %c0_20] : memref<9x4x256xf32, #tpu.memory_space<vmem>>, vector<1x4x256xf32>
    %56 = vector.shape_cast %55 : vector<1x4x256xf32> to vector<4x256xf32>
    %57 = vector.shape_cast %56 : vector<4x256xf32> to vector<1x4x256xf32>
    %58 = vector.broadcast %57 : vector<1x4x256xf32> to vector<2x4x256xf32>
    %59 = arith.mulf %58, %49 : vector<2x4x256xf32>
    %60 = arith.addf %42, %54 : vector<2x4x256xf32>
    %61 = arith.addf %47, %59 : vector<2x4x256xf32>
    %c15_i32 = arith.constant 15 : i32
    %62 = tpu.dynamic_rotate %0 by %c15_i32 dim 2 : vector<2x4x256xf32>, i32 -> vector<2x4x256xf32>
    %c15_i32_21 = arith.constant 15 : i32
    %63 = tpu.dynamic_rotate %35 by %c15_i32_21 dim 2 : vector<2x4x256xf32>, i32 -> vector<2x4x256xf32>
    %c2 = arith.constant 2 : index
    %c0_22 = arith.constant 0 : index
    %c0_23 = arith.constant 0 : index
    %64 = vector.load %arg5[%c2, %c0_22, %c0_23] : memref<9x1x256xf32, #tpu.memory_space<vmem>>, vector<1x1x256xf32>
    %65 = vector.shape_cast %64 : vector<1x1x256xf32> to vector<1x256xf32>
    %66 = vector.shape_cast %65 : vector<1x256xf32> to vector<1x1x256xf32>
    %67 = vector.broadcast %66 : vector<1x1x256xf32> to vector<2x4x256xf32>
    %68 = arith.mulf %67, %62 : vector<2x4x256xf32>
    %c2_24 = arith.constant 2 : index
    %c0_25 = arith.constant 0 : index
    %c0_26 = arith.constant 0 : index
    %69 = vector.load %arg6[%c2_24, %c0_25, %c0_26] : memref<9x4x256xf32, #tpu.memory_space<vmem>>, vector<1x4x256xf32>
    %70 = vector.shape_cast %69 : vector<1x4x256xf32> to vector<4x256xf32>
    %71 = vector.shape_cast %70 : vector<4x256xf32> to vector<1x4x256xf32>
    %72 = vector.broadcast %71 : vector<1x4x256xf32> to vector<2x4x256xf32>
    %73 = arith.mulf %72, %63 : vector<2x4x256xf32>
    %74 = arith.addf %60, %68 : vector<2x4x256xf32>
    %75 = arith.addf %61, %73 : vector<2x4x256xf32>
    %c1_i32 = arith.constant 1 : i32
    %76 = tpu.dynamic_rotate %0 by %c1_i32 dim 2 : vector<2x4x256xf32>, i32 -> vector<2x4x256xf32>
    %c1_i32_27 = arith.constant 1 : i32
    %77 = tpu.dynamic_rotate %35 by %c1_i32_27 dim 2 : vector<2x4x256xf32>, i32 -> vector<2x4x256xf32>
    %c3 = arith.constant 3 : index
    %c0_28 = arith.constant 0 : index
    %c0_29 = arith.constant 0 : index
    %78 = vector.load %arg5[%c3, %c0_28, %c0_29] : memref<9x1x256xf32, #tpu.memory_space<vmem>>, vector<1x1x256xf32>
    %79 = vector.shape_cast %78 : vector<1x1x256xf32> to vector<1x256xf32>
    %80 = vector.shape_cast %79 : vector<1x256xf32> to vector<1x1x256xf32>
    %81 = vector.broadcast %80 : vector<1x1x256xf32> to vector<2x4x256xf32>
    %82 = arith.mulf %81, %76 : vector<2x4x256xf32>
    %c3_30 = arith.constant 3 : index
    %c0_31 = arith.constant 0 : index
    %c0_32 = arith.constant 0 : index
    %83 = vector.load %arg6[%c3_30, %c0_31, %c0_32] : memref<9x4x256xf32, #tpu.memory_space<vmem>>, vector<1x4x256xf32>
    %84 = vector.shape_cast %83 : vector<1x4x256xf32> to vector<4x256xf32>
    %85 = vector.shape_cast %84 : vector<4x256xf32> to vector<1x4x256xf32>
    %86 = vector.broadcast %85 : vector<1x4x256xf32> to vector<2x4x256xf32>
    %87 = arith.mulf %86, %77 : vector<2x4x256xf32>
    %88 = arith.addf %74, %82 : vector<2x4x256xf32>
    %89 = arith.addf %75, %87 : vector<2x4x256xf32>
    %c4 = arith.constant 4 : index
    %c0_33 = arith.constant 0 : index
    %c0_34 = arith.constant 0 : index
    %90 = vector.load %arg5[%c4, %c0_33, %c0_34] : memref<9x1x256xf32, #tpu.memory_space<vmem>>, vector<1x1x256xf32>
    %91 = vector.shape_cast %90 : vector<1x1x256xf32> to vector<1x256xf32>
    %92 = vector.shape_cast %91 : vector<1x256xf32> to vector<1x1x256xf32>
    %93 = vector.broadcast %92 : vector<1x1x256xf32> to vector<2x4x256xf32>
    %94 = arith.mulf %93, %0 : vector<2x4x256xf32>
    %c4_35 = arith.constant 4 : index
    %c0_36 = arith.constant 0 : index
    %c0_37 = arith.constant 0 : index
    %95 = vector.load %arg6[%c4_35, %c0_36, %c0_37] : memref<9x4x256xf32, #tpu.memory_space<vmem>>, vector<1x4x256xf32>
    %96 = vector.shape_cast %95 : vector<1x4x256xf32> to vector<4x256xf32>
    %97 = vector.shape_cast %96 : vector<4x256xf32> to vector<1x4x256xf32>
    %98 = vector.broadcast %97 : vector<1x4x256xf32> to vector<2x4x256xf32>
    %99 = arith.mulf %98, %35 : vector<2x4x256xf32>
    %100 = arith.addf %88, %94 : vector<2x4x256xf32>
    %101 = arith.addf %89, %99 : vector<2x4x256xf32>
    %c255_i32 = arith.constant 255 : i32
    %102 = tpu.dynamic_rotate %0 by %c255_i32 dim 2 : vector<2x4x256xf32>, i32 -> vector<2x4x256xf32>
    %c255_i32_38 = arith.constant 255 : i32
    %103 = tpu.dynamic_rotate %35 by %c255_i32_38 dim 2 : vector<2x4x256xf32>, i32 -> vector<2x4x256xf32>
    %c5 = arith.constant 5 : index
    %c0_39 = arith.constant 0 : index
    %c0_40 = arith.constant 0 : index
    %104 = vector.load %arg5[%c5, %c0_39, %c0_40] : memref<9x1x256xf32, #tpu.memory_space<vmem>>, vector<1x1x256xf32>
    %105 = vector.shape_cast %104 : vector<1x1x256xf32> to vector<1x256xf32>
    %106 = vector.shape_cast %105 : vector<1x256xf32> to vector<1x1x256xf32>
    %107 = vector.broadcast %106 : vector<1x1x256xf32> to vector<2x4x256xf32>
    %108 = arith.mulf %107, %102 : vector<2x4x256xf32>
    %c5_41 = arith.constant 5 : index
    %c0_42 = arith.constant 0 : index
    %c0_43 = arith.constant 0 : index
    %109 = vector.load %arg6[%c5_41, %c0_42, %c0_43] : memref<9x4x256xf32, #tpu.memory_space<vmem>>, vector<1x4x256xf32>
    %110 = vector.shape_cast %109 : vector<1x4x256xf32> to vector<4x256xf32>
    %111 = vector.shape_cast %110 : vector<4x256xf32> to vector<1x4x256xf32>
    %112 = vector.broadcast %111 : vector<1x4x256xf32> to vector<2x4x256xf32>
    %113 = arith.mulf %112, %103 : vector<2x4x256xf32>
    %114 = arith.addf %100, %108 : vector<2x4x256xf32>
    %115 = arith.addf %101, %113 : vector<2x4x256xf32>
    %c241_i32 = arith.constant 241 : i32
    %116 = tpu.dynamic_rotate %0 by %c241_i32 dim 2 : vector<2x4x256xf32>, i32 -> vector<2x4x256xf32>
    %c241_i32_44 = arith.constant 241 : i32
    %117 = tpu.dynamic_rotate %35 by %c241_i32_44 dim 2 : vector<2x4x256xf32>, i32 -> vector<2x4x256xf32>
    %c6 = arith.constant 6 : index
    %c0_45 = arith.constant 0 : index
    %c0_46 = arith.constant 0 : index
    %118 = vector.load %arg5[%c6, %c0_45, %c0_46] : memref<9x1x256xf32, #tpu.memory_space<vmem>>, vector<1x1x256xf32>
    %119 = vector.shape_cast %118 : vector<1x1x256xf32> to vector<1x256xf32>
    %120 = vector.shape_cast %119 : vector<1x256xf32> to vector<1x1x256xf32>
    %121 = vector.broadcast %120 : vector<1x1x256xf32> to vector<2x4x256xf32>
    %122 = arith.mulf %121, %116 : vector<2x4x256xf32>
    %c6_47 = arith.constant 6 : index
    %c0_48 = arith.constant 0 : index
    %c0_49 = arith.constant 0 : index
    %123 = vector.load %arg6[%c6_47, %c0_48, %c0_49] : memref<9x4x256xf32, #tpu.memory_space<vmem>>, vector<1x4x256xf32>
    %124 = vector.shape_cast %123 : vector<1x4x256xf32> to vector<4x256xf32>
    %125 = vector.shape_cast %124 : vector<4x256xf32> to vector<1x4x256xf32>
    %126 = vector.broadcast %125 : vector<1x4x256xf32> to vector<2x4x256xf32>
    %127 = arith.mulf %126, %117 : vector<2x4x256xf32>
    %128 = arith.addf %114, %122 : vector<2x4x256xf32>
    %129 = arith.addf %115, %127 : vector<2x4x256xf32>
    %c240_i32 = arith.constant 240 : i32
    %130 = tpu.dynamic_rotate %0 by %c240_i32 dim 2 : vector<2x4x256xf32>, i32 -> vector<2x4x256xf32>
    %c240_i32_50 = arith.constant 240 : i32
    %131 = tpu.dynamic_rotate %35 by %c240_i32_50 dim 2 : vector<2x4x256xf32>, i32 -> vector<2x4x256xf32>
    %c7 = arith.constant 7 : index
    %c0_51 = arith.constant 0 : index
    %c0_52 = arith.constant 0 : index
    %132 = vector.load %arg5[%c7, %c0_51, %c0_52] : memref<9x1x256xf32, #tpu.memory_space<vmem>>, vector<1x1x256xf32>
    %133 = vector.shape_cast %132 : vector<1x1x256xf32> to vector<1x256xf32>
    %134 = vector.shape_cast %133 : vector<1x256xf32> to vector<1x1x256xf32>
    %135 = vector.broadcast %134 : vector<1x1x256xf32> to vector<2x4x256xf32>
    %136 = arith.mulf %135, %130 : vector<2x4x256xf32>
    %c7_53 = arith.constant 7 : index
    %c0_54 = arith.constant 0 : index
    %c0_55 = arith.constant 0 : index
    %137 = vector.load %arg6[%c7_53, %c0_54, %c0_55] : memref<9x4x256xf32, #tpu.memory_space<vmem>>, vector<1x4x256xf32>
    %138 = vector.shape_cast %137 : vector<1x4x256xf32> to vector<4x256xf32>
    %139 = vector.shape_cast %138 : vector<4x256xf32> to vector<1x4x256xf32>
    %140 = vector.broadcast %139 : vector<1x4x256xf32> to vector<2x4x256xf32>
    %141 = arith.mulf %140, %131 : vector<2x4x256xf32>
    %142 = arith.addf %128, %136 : vector<2x4x256xf32>
    %143 = arith.addf %129, %141 : vector<2x4x256xf32>
    %c239_i32 = arith.constant 239 : i32
    %144 = tpu.dynamic_rotate %0 by %c239_i32 dim 2 : vector<2x4x256xf32>, i32 -> vector<2x4x256xf32>
    %c239_i32_56 = arith.constant 239 : i32
    %145 = tpu.dynamic_rotate %35 by %c239_i32_56 dim 2 : vector<2x4x256xf32>, i32 -> vector<2x4x256xf32>
    %c8 = arith.constant 8 : index
    %c0_57 = arith.constant 0 : index
    %c0_58 = arith.constant 0 : index
    %146 = vector.load %arg5[%c8, %c0_57, %c0_58] : memref<9x1x256xf32, #tpu.memory_space<vmem>>, vector<1x1x256xf32>
    %147 = vector.shape_cast %146 : vector<1x1x256xf32> to vector<1x256xf32>
    %148 = vector.shape_cast %147 : vector<1x256xf32> to vector<1x1x256xf32>
    %149 = vector.broadcast %148 : vector<1x1x256xf32> to vector<2x4x256xf32>
    %150 = arith.mulf %149, %144 : vector<2x4x256xf32>
    %c8_59 = arith.constant 8 : index
    %c0_60 = arith.constant 0 : index
    %c0_61 = arith.constant 0 : index
    %151 = vector.load %arg6[%c8_59, %c0_60, %c0_61] : memref<9x4x256xf32, #tpu.memory_space<vmem>>, vector<1x4x256xf32>
    %152 = vector.shape_cast %151 : vector<1x4x256xf32> to vector<4x256xf32>
    %153 = vector.shape_cast %152 : vector<4x256xf32> to vector<1x4x256xf32>
    %154 = vector.broadcast %153 : vector<1x4x256xf32> to vector<2x4x256xf32>
    %155 = arith.mulf %154, %145 : vector<2x4x256xf32>
    %156 = arith.addf %142, %150 : vector<2x4x256xf32>
    %157 = arith.addf %143, %155 : vector<2x4x256xf32>
    %158 = vector.extract_strided_slice %2 {offsets = [0, 0], sizes = [8, 1], strides = [1, 1]} : vector<8x4xf32> to vector<8x1xf32>
    %159 = vector.extract_strided_slice %157 {offsets = [0, 0, 0], sizes = [2, 1, 256], strides = [1, 1, 1]} : vector<2x4x256xf32> to vector<2x1x256xf32>
    %160 = vector.shape_cast %158 : vector<8x1xf32> to vector<1x8x1xf32>
    %161 = vector.broadcast %160 : vector<1x8x1xf32> to vector<2x8x256xf32>
    %162 = vector.broadcast %159 : vector<2x1x256xf32> to vector<2x8x256xf32>
    %163 = arith.mulf %161, %162 : vector<2x8x256xf32>
    %164 = vector.extract_strided_slice %2 {offsets = [0, 1], sizes = [8, 1], strides = [1, 1]} : vector<8x4xf32> to vector<8x1xf32>
    %165 = vector.extract_strided_slice %157 {offsets = [0, 1, 0], sizes = [2, 1, 256], strides = [1, 1, 1]} : vector<2x4x256xf32> to vector<2x1x256xf32>
    %166 = vector.shape_cast %164 : vector<8x1xf32> to vector<1x8x1xf32>
    %167 = vector.broadcast %166 : vector<1x8x1xf32> to vector<2x8x256xf32>
    %168 = vector.broadcast %165 : vector<2x1x256xf32> to vector<2x8x256xf32>
    %169 = arith.mulf %167, %168 : vector<2x8x256xf32>
    %170 = arith.addf %163, %169 : vector<2x8x256xf32>
    %171 = vector.extract_strided_slice %2 {offsets = [0, 2], sizes = [8, 1], strides = [1, 1]} : vector<8x4xf32> to vector<8x1xf32>
    %172 = vector.extract_strided_slice %157 {offsets = [0, 2, 0], sizes = [2, 1, 256], strides = [1, 1, 1]} : vector<2x4x256xf32> to vector<2x1x256xf32>
    %173 = vector.shape_cast %171 : vector<8x1xf32> to vector<1x8x1xf32>
    %174 = vector.broadcast %173 : vector<1x8x1xf32> to vector<2x8x256xf32>
    %175 = vector.broadcast %172 : vector<2x1x256xf32> to vector<2x8x256xf32>
    %176 = arith.mulf %174, %175 : vector<2x8x256xf32>
    %177 = arith.addf %170, %176 : vector<2x8x256xf32>
    %178 = vector.extract_strided_slice %2 {offsets = [0, 3], sizes = [8, 1], strides = [1, 1]} : vector<8x4xf32> to vector<8x1xf32>
    %179 = vector.extract_strided_slice %157 {offsets = [0, 3, 0], sizes = [2, 1, 256], strides = [1, 1, 1]} : vector<2x4x256xf32> to vector<2x1x256xf32>
    %180 = vector.shape_cast %178 : vector<8x1xf32> to vector<1x8x1xf32>
    %181 = vector.broadcast %180 : vector<1x8x1xf32> to vector<2x8x256xf32>
    %182 = vector.broadcast %179 : vector<2x1x256xf32> to vector<2x8x256xf32>
    %183 = arith.mulf %181, %182 : vector<2x8x256xf32>
    %184 = arith.addf %177, %183 : vector<2x8x256xf32>
    %c4_62 = arith.constant 4 : index
    %c0_63 = arith.constant 0 : index
    %185 = vector.load %arg4[%c4_62, %c0_63] : memref<12x1xf32, #tpu.memory_space<vmem>>, vector<8x1xf32>
    %186 = vector.shape_cast %185 : vector<8x1xf32> to vector<1x8x1xf32>
    %187 = vector.broadcast %186 : vector<1x8x1xf32> to vector<2x8x256xf32>
    %188 = arith.addf %184, %187 : vector<2x8x256xf32>
    %cst_64 = arith.constant 0.000000e+00 : f32
    %189 = vector.broadcast %cst_64 : f32 to vector<2x4x256xf32>
    %190 = arith.maximumf %156, %189 : vector<2x4x256xf32>
    %c0_65 = arith.constant 0 : index
    %c0_66 = arith.constant 0 : index
    %c0_67 = arith.constant 0 : index
    %191 = vector.load %arg7[%c0_65, %c0_66, %c0_67] : memref<2x12x256xf32, #tpu.memory_space<vmem>>, vector<2x4x256xf32>
    tpu.vector_store %arg7[%c0_65, %c0_66, %c0_67], %190 {strides = array<i32>} : memref<2x12x256xf32, #tpu.memory_space<vmem>>, vector<2x4x256xf32>,
    %cst_68 = arith.constant 0.000000e+00 : f32
    %192 = vector.broadcast %cst_68 : f32 to vector<2x8x256xf32>
    %193 = arith.maximumf %188, %192 : vector<2x8x256xf32>
    %c0_69 = arith.constant 0 : index
    %c4_70 = arith.constant 4 : index
    %c0_71 = arith.constant 0 : index
    %194 = vector.load %arg7[%c0_69, %c4_70, %c0_71] : memref<2x12x256xf32, #tpu.memory_space<vmem>>, vector<2x8x256xf32>
    tpu.vector_store %arg7[%c0_69, %c4_70, %c0_71], %193 {strides = array<i32>} : memref<2x12x256xf32, #tpu.memory_space<vmem>>, vector<2x8x256xf32>,
    return
  }
  func.func @transform_0(%arg0: i32) -> (i32, i32, i32) {
    %c0_i32 = arith.constant 0 : i32
    %c0_i32_0 = arith.constant 0 : i32
    %c0_i32_1 = arith.constant 0 : i32
    return %arg0, %c0_i32, %c0_i32_0 : i32, i32, i32
  }
  func.func @transform_1(%arg0: i32) -> (i32, i32) {
    %c0_i32 = arith.constant 0 : i32
    %c0_i32_0 = arith.constant 0 : i32
    %c0_i32_1 = arith.constant 0 : i32
    return %c0_i32, %c0_i32_0 : i32, i32
  }
  func.func @transform_2(%arg0: i32) -> (i32, i32) {
    %c0_i32 = arith.constant 0 : i32
    %c0_i32_0 = arith.constant 0 : i32
    %c0_i32_1 = arith.constant 0 : i32
    return %c0_i32, %c0_i32_0 : i32, i32
  }
  func.func @transform_3(%arg0: i32) -> (i32, i32) {
    %c0_i32 = arith.constant 0 : i32
    %c0_i32_0 = arith.constant 0 : i32
    %c0_i32_1 = arith.constant 0 : i32
    return %c0_i32, %c0_i32_0 : i32, i32
  }
  func.func @transform_4(%arg0: i32) -> (i32, i32, i32) {
    %c0_i32 = arith.constant 0 : i32
    %c0_i32_0 = arith.constant 0 : i32
    %c0_i32_1 = arith.constant 0 : i32
    %c0_i32_2 = arith.constant 0 : i32
    return %c0_i32, %c0_i32_0, %c0_i32_1 : i32, i32, i32
  }
  func.func @transform_5(%arg0: i32) -> (i32, i32, i32) {
    %c0_i32 = arith.constant 0 : i32
    %c0_i32_0 = arith.constant 0 : i32
    %c0_i32_1 = arith.constant 0 : i32
    %c0_i32_2 = arith.constant 0 : i32
    return %c0_i32, %c0_i32_0, %c0_i32_1 : i32, i32, i32
  }
  func.func @transform_6(%arg0: i32) -> (i32, i32, i32) {
    %c0_i32 = arith.constant 0 : i32
    %c0_i32_0 = arith.constant 0 : i32
    %c0_i32_1 = arith.constant 0 : i32
    return %arg0, %c0_i32, %c0_i32_0 : i32, i32, i32
  }
}

</mosaic_0001>

<llo_original>
// kernel: tpu_custom_call.1
$region0: #{tpu_custom_call.1}
  #allocation0 [shape = 'u32[]', space=smem, size = 0x4, offset = 0x4, fixed_abs, tag = 'smem constant byte address 0x4 - core index']
  #allocation1 [shape = 'u32[144,128]{1,0:T(1,128)}', space=vmem, size = 0x12000, scoped, tag = 'internal scratch']
  %s0 = inlined_call_operand.hbm [shape: f32[4,4,256], index: 0, kind: input, shape index: {}]
  %s1 = inlined_call_operand.vmem [shape: f32[4,4], index: 1, kind: input, shape index: {}]
  %s2 = inlined_call_operand.vmem [shape: f32[8,4], index: 2, kind: input, shape index: {}]
  %s3 = inlined_call_operand.vmem [shape: f32[12,1], index: 3, kind: input, shape index: {}]
  %s4 = inlined_call_operand.vmem [shape: f32[9,1,256], index: 4, kind: input, shape index: {}]
  %s5 = inlined_call_operand.hbm [shape: f32[9,4,256], index: 5, kind: input, shape index: {}]
  %s6 = inlined_call_operand.vmem [shape: f32[4,12,256], index: 6, kind: output, shape index: {}]
  %s7 = sld [smem:[#allocation0]]
  $region65: #{tpu_custom_call.1} parent=0
    _
  %s9 = ssub.s32 1, %s7
  %s10 = scalar_select 0, %s9, %s7
  $region1: #{tpu_custom_call.1} parent=0
    #allocation2 [shape = 'u8[16384]{0}', space=vmem, size = 0x4000, scoped, tag = 'input window, operand 0']
    #allocation3 [shape = 's32[2]{0}', space=sflag, size = 0x8, scoped, tag = 'scoped memory for tpu_custom_call.1']
    #allocation4 [shape = 'u8[36864]{0}', space=vmem, size = 0x9000, scoped, tag = 'input window, operand 5, single buffered']
    #allocation5 [shape = 's32[1]{0}', space=sflag, size = 0x4, scoped, tag = 'scoped memory for tpu_custom_call.1']
    %11 = vsyncpa [#allocation3], 0
    %s12 = scalar_lea.sflag [#allocation3], 1
    %13 = vsyncpa %s12, 0
    %14 = vsyncpa [#allocation5], 0
    loop: start=0, step=1, limit=4
    $region2: #{tpu_custom_call.1} parent=1 // loop_pre_header
      _
    $region3: #{tpu_custom_call.1} parent=1 // loop_header
      %s16 = sphi 0, %s20
      %p17 = scmp.ge.s32.totalorder %s16, 4
      %s26 = sphi 0, %s28
      %s29 = sphi 0, %s26
      %s30 = sphi 0, %s29
      %s46 = sphi 0, %s30
      %s50 = sphi 0, %s50
      %s52 = sphi 0, %s50
      %s53 = sphi 0, %s52
      %s67 = sphi 0, %s53
      %s71 = sphi 0, %s71
      %s73 = sphi 0, %s71
      %s74 = sphi 0, %s73
      %s88 = sphi 0, %s74
      %s92 = sphi 0, %s92
      %s94 = sphi 0, %s92
      %s95 = sphi 0, %s94
      %s109 = sphi 0, %s95
      %s113 = sphi 0, %s113
      %s115 = sphi 0, %s113
      %s116 = sphi 0, %s115
      %s130 = sphi 0, %s116
      %s134 = sphi 0, %s134
      %s136 = sphi 0, %s134
      %s137 = sphi 0, %s136
      %s151 = sphi 0, %s137
      %s157 = sphi 0, %s159
      %s160 = sphi 0, %s157
      %s161 = sphi 0, %s160
      %s177 = sphi 0, %s161
    $region4: #{tpu_custom_call.1} parent=1 // loop_header_branch
      %19 = sbr.rel (%p17) target = $region8
    $region5: #{tpu_custom_call.1} parent=1 // loop_body
      %s21 = ssub.s32 %s16, 1
      %s22 = ssub.s32 %s16, 2
      %s23 = sadd.s32 %s16, 1
      %s24 = ssub.s32 %s16, %s23
      %p25 = scmp.eq.s32.totalorder %s24, 0
      %s27 = sadd.s32 %s26, 1
      %s28 = scalar_select %p25, %s26, %s27
      %p31 = pneg %p25
      %p32 = scmp.eq.s32.totalorder %s16, 1
      %p33 = por %p31, %p32
      %p34 = scmp.ne.s32.totalorder %s26, %s29
      %p35 = scmp.eq.s32.totalorder %s16, 0
      %p36 = por %p34, %p35
      %p37 = scmp.ne.s32.totalorder %s26, %s29
      %p38 = scmp.eq.s32.totalorder %s21, 1
      %p39 = por %p37, %p38
      %p40 = scmp.ne.s32.totalorder %s29, %s30
      %p41 = scmp.eq.s32.totalorder %s21, 0
      %p42 = por %p40, %p41
      %p43 = scmp.ne.s32.totalorder %s29, %s30
      %p44 = scmp.eq.s32.totalorder %s22, 1
      %p45 = por %p43, %p44
      %p47 = scmp.ne.s32.totalorder %s30, %s46
      %p48 = scmp.eq.s32.totalorder %s22, 0
      %p49 = por %p47, %p48
      %s51 = sadd.s32 %s50, 1
      %p54 = scmp.eq.s32.totalorder %s16, 1
      %p55 = scmp.ne.s32.totalorder %s50, %s52
      %p56 = scmp.eq.s32.totalorder %s16, 0
      %p57 = por %p55, %p56
      %p58 = scmp.ne.s32.totalorder %s50, %s52
      %p59 = scmp.eq.s32.totalorder %s21, 1
      %p60 = por %p58, %p59
      %p61 = scmp.ne.s32.totalorder %s52, %s53
      %p62 = scmp.eq.s32.totalorder %s21, 0
      %p63 = por %p61, %p62
      %p64 = scmp.ne.s32.totalorder %s52, %s53
      %p65 = scmp.eq.s32.totalorder %s22, 1
      %p66 = por %p64, %p65
      %p68 = scmp.ne.s32.totalorder %s53, %s67
      %p69 = scmp.eq.s32.totalorder %s22, 0
      %p70 = por %p68, %p69
      %s72 = sadd.s32 %s71, 1
      %p75 = scmp.eq.s32.totalorder %s16, 1
      %p76 = scmp.ne.s32.totalorder %s71, %s73
      %p77 = scmp.eq.s32.totalorder %s16, 0
      %p78 = por %p76, %p77
      %p79 = scmp.ne.s32.totalorder %s71, %s73
      %p80 = scmp.eq.s32.totalorder %s21, 1
      %p81 = por %p79, %p80
      %p82 = scmp.ne.s32.totalorder %s73, %s74
      %p83 = scmp.eq.s32.totalorder %s21, 0
      %p84 = por %p82, %p83
      %p85 = scmp.ne.s32.totalorder %s73, %s74
      %p86 = scmp.eq.s32.totalorder %s22, 1
      %p87 = por %p85, %p86
      %p89 = scmp.ne.s32.totalorder %s74, %s88
      %p90 = scmp.eq.s32.totalorder %s22, 0
      %p91 = por %p89, %p90
      %s93 = sadd.s32 %s92, 1
      %p96 = scmp.eq.s32.totalorder %s16, 1
      %p97 = scmp.ne.s32.totalorder %s92, %s94
      %p98 = scmp.eq.s32.totalorder %s16, 0
      %p99 = por %p97, %p98
      %p100 = scmp.ne.s32.totalorder %s92, %s94
      %p101 = scmp.eq.s32.totalorder %s21, 1
      %p102 = por %p100, %p101
      %p103 = scmp.ne.s32.totalorder %s94, %s95
      %p104 = scmp.eq.s32.totalorder %s21, 0
      %p105 = por %p103, %p104
      %p106 = scmp.ne.s32.totalorder %s94, %s95
      %p107 = scmp.eq.s32.totalorder %s22, 1
      %p108 = por %p106, %p107
      %p110 = scmp.ne.s32.totalorder %s95, %s109
      %p111 = scmp.eq.s32.totalorder %s22, 0
      %p112 = por %p110, %p111
      %s114 = sadd.s32 %s113, 1
      %p117 = scmp.eq.s32.totalorder %s16, 1
      %p118 = scmp.ne.s32.totalorder %s113, %s115
      %p119 = scmp.eq.s32.totalorder %s16, 0
      %p120 = por %p118, %p119
      %p121 = scmp.ne.s32.totalorder %s113, %s115
      %p122 = scmp.eq.s32.totalorder %s21, 1
      %p123 = por %p121, %p122
      %p124 = scmp.ne.s32.totalorder %s115, %s116
      %p125 = scmp.eq.s32.totalorder %s21, 0
      %p126 = por %p124, %p125
      %p127 = scmp.ne.s32.totalorder %s115, %s116
      %p128 = scmp.eq.s32.totalorder %s22, 1
      %p129 = por %p127, %p128
      %p131 = scmp.ne.s32.totalorder %s116, %s130
      %p132 = scmp.eq.s32.totalorder %s22, 0
      %p133 = por %p131, %p132
      %s135 = sadd.s32 %s134, 1
      %p138 = scmp.eq.s32.totalorder %s16, 1
      %p139 = scmp.ne.s32.totalorder %s134, %s136
      %p140 = scmp.eq.s32.totalorder %s16, 0
      %p141 = por %p139, %p140
      %p142 = scmp.ne.s32.totalorder %s134, %s136
      %p143 = scmp.eq.s32.totalorder %s21, 1
      %p144 = por %p142, %p143
      %p145 = scmp.ne.s32.totalorder %s136, %s137
      %p146 = scmp.eq.s32.totalorder %s21, 0
      %p147 = por %p145, %p146
      %p148 = scmp.ne.s32.totalorder %s136, %s137
      %p149 = scmp.eq.s32.totalorder %s22, 1
      %p150 = por %p148, %p149
      %p152 = scmp.ne.s32.totalorder %s137, %s151
      %p153 = scmp.eq.s32.totalorder %s22, 0
      %p154 = por %p152, %p153
      %s155 = ssub.s32 %s16, %s23
      %p156 = scmp.eq.s32.totalorder %s155, 0
      %s158 = sadd.s32 %s157, 1
      %s159 = scalar_select %p156, %s157, %s158
      %p162 = pneg %p156
      %p163 = scmp.eq.s32.totalorder %s16, 1
      %p164 = por %p162, %p163
      %p165 = scmp.ne.s32.totalorder %s157, %s160
      %p166 = scmp.eq.s32.totalorder %s16, 0
      %p167 = por %p165, %p166
      %p168 = scmp.ne.s32.totalorder %s157, %s160
      %p169 = scmp.eq.s32.totalorder %s21, 1
      %p170 = por %p168, %p169
      %p171 = scmp.ne.s32.totalorder %s160, %s161
      %p172 = scmp.eq.s32.totalorder %s21, 0
      %p173 = por %p171, %p172
      %p174 = scmp.ne.s32.totalorder %s160, %s161
      %p175 = scmp.eq.s32.totalorder %s22, 1
      %p176 = por %p174, %p175
      %p178 = scmp.ne.s32.totalorder %s161, %s177
      %p179 = scmp.eq.s32.totalorder %s22, 0
      %p180 = por %p178, %p179
      %p181 = scmp.le.s32.totalorder 1, %s16
      %p182 = scmp.lt.s32.totalorder %s16, 3
      %p183 = pnand %p181, %p182
      %p184 = pneg %p183
      // Predicated region
      $region9: #{tpu_custom_call.1} parent=5 // pred_check
        _
      $region10: #{tpu_custom_call.1} parent=5 // pred_check_branch
        %186 = sbr.rel (%p183) target = $region12
      $region11: #{tpu_custom_call.1} parent=5 // pred_region
        %s187 = ssub.s32 %s16, 1
        // Predicated region
        $region13: #{tpu_custom_call.1} parent=11 // pred_check
          %p188 = pneg %p63
        $region14: #{tpu_custom_call.1} parent=11 // pred_check_branch
          %190 = sbr.rel (%p188) target = $region16
        $region15: #{tpu_custom_call.1} parent=11 // pred_region
          _
        $region16: #{tpu_custom_call.1} parent=11 // pred_fallthru
          _
        // Predicated region
        $region17: #{tpu_custom_call.1} parent=11 // pred_check
          %p191 = pneg %p84
        $region18: #{tpu_custom_call.1} parent=11 // pred_check_branch
          %193 = sbr.rel (%p191) target = $region20
        $region19: #{tpu_custom_call.1} parent=11 // pred_region
          _
        $region20: #{tpu_custom_call.1} parent=11 // pred_fallthru
          _
        // Predicated region
        $region21: #{tpu_custom_call.1} parent=11 // pred_check
          %p194 = pneg %p105
        $region22: #{tpu_custom_call.1} parent=11 // pred_check_branch
          %196 = sbr.rel (%p194) target = $region24
        $region23: #{tpu_custom_call.1} parent=11 // pred_region
          _
        $region24: #{tpu_custom_call.1} parent=11 // pred_fallthru
          _
        // Predicated region
        $region25: #{tpu_custom_call.1} parent=11 // pred_check
          %p197 = pneg %p126
        $region26: #{tpu_custom_call.1} parent=11 // pred_check_branch
          %199 = sbr.rel (%p197) target = $region28
        $region27: #{tpu_custom_call.1} parent=11 // pred_region
          _
        $region28: #{tpu_custom_call.1} parent=11 // pred_fallthru
          _
        // Predicated region
        $region29: #{tpu_custom_call.1} parent=11 // pred_check
          %p200 = pneg %p147
        $region30: #{tpu_custom_call.1} parent=11 // pred_check_branch
          %202 = sbr.rel (%p200) target = $region32
        $region31: #{tpu_custom_call.1} parent=11 // pred_region
          %s204 = ssub.s32 1152, 1152
          %205 = vsyncadd [#allocation5], %s204
          %s206 = sshll.u32 [#allocation4], 4
          %s207 = int_to_ptr.vmem [resolvable:$true] %s206
          %212 = dma.hbm_to_vmem [thread:$0]  %s5, 1152, %s207, [#allocation5], 128, 128, 8
        $region32: #{tpu_custom_call.1} parent=11 // pred_fallthru
          _
      $region12: #{tpu_custom_call.1} parent=5 // pred_fallthru
        _
      %p213 = scmp.lt.s32.totalorder %s16, 2
      // Predicated region
      $region33: #{tpu_custom_call.1} parent=5 // pred_check
        %p214 = pneg %p213
      $region34: #{tpu_custom_call.1} parent=5 // pred_check_branch
        %216 = sbr.rel (%p214) target = $region36
      $region35: #{tpu_custom_call.1} parent=5 // pred_region
        // Predicated region
        $region37: #{tpu_custom_call.1} parent=35 // pred_check
          %p217 = pneg %p36
        $region38: #{tpu_custom_call.1} parent=35 // pred_check_branch
          %219 = sbr.rel (%p217) target = $region40
        $region39: #{tpu_custom_call.1} parent=35 // pred_region
          %s220 = sand.u32 %s26, 1
          %s221 = scalar_lea.sflag [#allocation3], %s220
          %s222 = sand.u32 %s26, 1
          %s223 = smul.addr %s222, 16
          %s224 = scalar_lea.vmem [#allocation2], %s223
          %s225 = smul.u32 2, %s16
          %s227 = ssub.s32 256, 256
          %228 = vsyncadd %s221, %s227
          %s229 = smul.addr %s225, 2
          %s230 = smul.addr %s229, 64
          %s231 = scalar_lea.hbm %s0, %s230
          %s232 = sshll.u32 %s224, 4
          %s233 = int_to_ptr.vmem [resolvable:$true] %s232
          %238 = dma.hbm_to_vmem [thread:$0]  %s231, 256, %s233, %s221, 128, 128, 8
        $region40: #{tpu_custom_call.1} parent=35 // pred_fallthru
          _
      $region36: #{tpu_custom_call.1} parent=5 // pred_fallthru
        _
      %p239 = scmp.le.s32.totalorder 1, %s16
      %p240 = scmp.lt.s32.totalorder %s16, 3
      %p241 = pnand %p239, %p240
      %p242 = pneg %p241
      // Predicated region
      $region41: #{tpu_custom_call.1} parent=5 // pred_check
        _
      $region42: #{tpu_custom_call.1} parent=5 // pred_check_branch
        %244 = sbr.rel (%p241) target = $region44
      $region43: #{tpu_custom_call.1} parent=5 // pred_region
        %s245 = ssub.s32 %s16, 1
        %s246 = sand.u32 %s29, 1
        %s247 = scalar_lea.sflag [#allocation3], %s246
        %s248 = sand.u32 %s29, 1
        %s249 = smul.addr %s248, 16
        %s250 = scalar_lea.vmem [#allocation2], %s249
        // Predicated region
        $region45: #{tpu_custom_call.1} parent=43 // pred_check
          %p251 = pneg %p42
        $region46: #{tpu_custom_call.1} parent=43 // pred_check_branch
          %253 = sbr.rel (%p251) target = $region48
        $region47: #{tpu_custom_call.1} parent=43 // pred_region
          %254 = dma.done %s247, 256
        $region48: #{tpu_custom_call.1} parent=43 // pred_fallthru
          _
        // Predicated region
        $region49: #{tpu_custom_call.1} parent=43 // pred_check
          %p255 = pneg %p147
        $region50: #{tpu_custom_call.1} parent=43 // pred_check_branch
          %257 = sbr.rel (%p255) target = $region52
        $region51: #{tpu_custom_call.1} parent=43 // pred_region
          %258 = dma.done [#allocation5], 1152
        $region52: #{tpu_custom_call.1} parent=43 // pred_fallthru
          _
        %s259 = sand.u32 %s29, 1
        %s260 = scalar_lea.sflag [#allocation3], %s259
        %s261 = sand.u32 %s29, 1
        %s262 = smul.addr %s261, 16
        %s263 = scalar_lea.vmem [#allocation2], %s262
        %p264 = pneg %p42
        %p265 = pneg %p39
        %p266 = pneg %p63
        %p267 = pneg %p60
        %p268 = pneg %p84
        %p269 = pneg %p81
        %p270 = pneg %p105
        %p271 = pneg %p102
        %p272 = pneg %p126
        %p273 = pneg %p123
        %p274 = pneg %p147
        %p275 = pneg %p144
        %p276 = pneg %p173
        %p277 = pneg %p170
        %s278 = smul.u32 2, %s21
        %p279 = scmp.lt.s32.totalorder %s278, 3
        %s280 = scalar_select %p279, %s278, 3
        %s281 = smul.addr %s280, 4
        %s282 = smul.addr %s281, 8
        %s283 = scalar_lea.vmem %s6, %s282
        %s284 = smul.u32 2, %s21
        %s285 = smul.u32 2, %s21
        %p286 = scmp.lt.s32.totalorder %s285, 3
        %s287 = scalar_select %p286, %s285, 3
        %s288 = smul.addr %s287, 4
        %s289 = smul.addr %s288, 8
        %s290 = scalar_lea.vmem %s6, %s289
        %s291 = smul.u32 2, %s21
        %v292 = vld [vmem:[%s250] sm:$0xff]
        %v293 = vld [vmem:[%s250 + $0x8] sm:$0xff]
        %v294 = vld [vmem:[%s1] sm:$0xf]
        %v295 = vld [vmem:[%s2] sm:$0xff]
        %297 = vset.pattern.permute.xlu0 0
        %298 = vperm.xlu0 %297, %v294
        %v299 = vpop.permute.xlu0 %298
        %v303 = vlaneseq
        %v304 = vshrl.u32 %v303, 7
        %v305 = vsub.s32 0, %v304
        %v306 = vrot.slane %v292, %v305
        %v307 = vlaneseq
        %v308 = vshrl.u32 %v307, 7
        %v309 = vsub.s32 4, %v308
        %v310 = vrot.slane %v292, %v309
        %v311 = vlaneseq
        %v312 = vshrl.u32 %v311, 7
        %v313 = vsub.s32 0, %v312
        %v314 = vrot.slane %v293, %v313
        %v315 = vlaneseq
        %v316 = vshrl.u32 %v315, 7
        %v317 = vsub.s32 4, %v316
        %v318 = vrot.slane %v293, %v317
        %v323 = vlaneseq
        %v324 = vshrl.u32 %v323, 7
        %v325 = vsub.s32 0, %v324
        %v326 = vrot.slane %v306, %v325
        %v327 = vlaneseq
        %v328 = vshrl.u32 %v327, 7
        %v329 = vsub.s32 0, %v328
        %v330 = vrot.slane %v310, %v329
        %v331 = vlaneseq
        %v332 = vshrl.u32 %v331, 7
        %v333 = vsub.s32 0, %v332
        %v334 = vrot.slane %v314, %v333
        %v335 = vlaneseq
        %v336 = vshrl.u32 %v335, 7
        %v337 = vsub.s32 0, %v336
        %v338 = vrot.slane %v318, %v337
        %v339 = vmul.f32 %v299, %v326
        %v340 = vmul.f32 %v299, %v330
        %v341 = vmul.f32 %v299, %v334
        %v342 = vmul.f32 %v299, %v338
        %343 = vset.pattern.permute.xlu0 1
        %344 = vperm.xlu0 %343, %v294
        %v345 = vpop.permute.xlu0 %344
        %v347 = vlaneseq
        %v348 = vshrl.u32 %v347, 7
        %v349 = vsub.s32 1, %v348
        %v350 = vrot.slane %v292, %v349
        %v351 = vlaneseq
        %v352 = vshrl.u32 %v351, 7
        %v353 = vsub.s32 5, %v352
        %v354 = vrot.slane %v292, %v353
        %v355 = vlaneseq
        %v356 = vshrl.u32 %v355, 7
        %v357 = vsub.s32 1, %v356
        %v358 = vrot.slane %v293, %v357
        %v359 = vlaneseq
        %v360 = vshrl.u32 %v359, 7
        %v361 = vsub.s32 5, %v360
        %v362 = vrot.slane %v293, %v361
        %v367 = vlaneseq
        %v368 = vshrl.u32 %v367, 7
        %v369 = vsub.s32 1, %v368
        %v370 = vrot.slane %v350, %v369
        %v371 = vlaneseq
        %v372 = vshrl.u32 %v371, 7
        %v373 = vsub.s32 1, %v372
        %v374 = vrot.slane %v354, %v373
        %v375 = vlaneseq
        %v376 = vshrl.u32 %v375, 7
        %v377 = vsub.s32 1, %v376
        %v378 = vrot.slane %v358, %v377
        %v379 = vlaneseq
        %v380 = vshrl.u32 %v379, 7
        %v381 = vsub.s32 1, %v380
        %v382 = vrot.slane %v362, %v381
        %v383 = vmul.f32 %v345, %v370
        %v384 = vmul.f32 %v345, %v374
        %v385 = vmul.f32 %v345, %v378
        %v386 = vmul.f32 %v345, %v382
        %v387 = vadd.f32 %v339, %v383
        %v388 = vadd.f32 %v340, %v384
        %v389 = vadd.f32 %v341, %v385
        %v390 = vadd.f32 %v342, %v386
        %391 = vset.pattern.permute.xlu0 2
        %392 = vperm.xlu0 %391, %v294
        %v393 = vpop.permute.xlu0 %392
        %v395 = vlaneseq
        %v396 = vshrl.u32 %v395, 7
        %v397 = vsub.s32 2, %v396
        %v398 = vrot.slane %v292, %v397
        %v399 = vlaneseq
        %v400 = vshrl.u32 %v399, 7
        %v401 = vsub.s32 6, %v400
        %v402 = vrot.slane %v292, %v401
        %v403 = vlaneseq
        %v404 = vshrl.u32 %v403, 7
        %v405 = vsub.s32 2, %v404
        %v406 = vrot.slane %v293, %v405
        %v407 = vlaneseq
        %v408 = vshrl.u32 %v407, 7
        %v409 = vsub.s32 6, %v408
        %v410 = vrot.slane %v293, %v409
        %v415 = vlaneseq
        %v416 = vshrl.u32 %v415, 7
        %v417 = vsub.s32 2, %v416
        %v418 = vrot.slane %v398, %v417
        %v419 = vlaneseq
        %v420 = vshrl.u32 %v419, 7
        %v421 = vsub.s32 2, %v420
        %v422 = vrot.slane %v402, %v421
        %v423 = vlaneseq
        %v424 = vshrl.u32 %v423, 7
        %v425 = vsub.s32 2, %v424
        %v426 = vrot.slane %v406, %v425
        %v427 = vlaneseq
        %v428 = vshrl.u32 %v427, 7
        %v429 = vsub.s32 2, %v428
        %v430 = vrot.slane %v410, %v429
        %v431 = vmul.f32 %v393, %v418
        %v432 = vmul.f32 %v393, %v422
        %v433 = vmul.f32 %v393, %v426
        %v434 = vmul.f32 %v393, %v430
        %v435 = vadd.f32 %v387, %v431
        %v436 = vadd.f32 %v388, %v432
        %v437 = vadd.f32 %v389, %v433
        %v438 = vadd.f32 %v390, %v434
        %439 = vset.pattern.permute.xlu0 3
        %440 = vperm.xlu0 %439, %v294
        %v441 = vpop.permute.xlu0 %440
        %v443 = vlaneseq
        %v444 = vshrl.u32 %v443, 7
        %v445 = vsub.s32 3, %v444
        %v446 = vrot.slane %v292, %v445
        %v447 = vlaneseq
        %v448 = vshrl.u32 %v447, 7
        %v449 = vsub.s32 7, %v448
        %v450 = vrot.slane %v292, %v449
        %v451 = vlaneseq
        %v452 = vshrl.u32 %v451, 7
        %v453 = vsub.s32 3, %v452
        %v454 = vrot.slane %v293, %v453
        %v455 = vlaneseq
        %v456 = vshrl.u32 %v455, 7
        %v457 = vsub.s32 7, %v456
        %v458 = vrot.slane %v293, %v457
        %v463 = vlaneseq
        %v464 = vshrl.u32 %v463, 7
        %v465 = vsub.s32 3, %v464
        %v466 = vrot.slane %v446, %v465
        %v467 = vlaneseq
        %v468 = vshrl.u32 %v467, 7
        %v469 = vsub.s32 3, %v468
        %v470 = vrot.slane %v450, %v469
        %v471 = vlaneseq
        %v472 = vshrl.u32 %v471, 7
        %v473 = vsub.s32 3, %v472
        %v474 = vrot.slane %v454, %v473
        %v475 = vlaneseq
        %v476 = vshrl.u32 %v475, 7
        %v477 = vsub.s32 3, %v476
        %v478 = vrot.slane %v458, %v477
        %v479 = vmul.f32 %v441, %v466
        %v480 = vmul.f32 %v441, %v470
        %v481 = vmul.f32 %v441, %v474
        %v482 = vmul.f32 %v441, %v478
        %v483 = vadd.f32 %v435, %v479
        %v484 = vadd.f32 %v436, %v480
        %v485 = vadd.f32 %v437, %v481
        %v486 = vadd.f32 %v438, %v482
        %v487 = vld [vmem:[%s3] sm:$0xf]
        %489 = vset.pattern.permute.xlu0 0
        %490 = vperm.xlu0 %489, %v487
        %v491 = vpop.permute.xlu0 %490
        %v493 = vadd.f32 %v483, %v491
        %v494 = vadd.f32 %v484, %v491
        %v495 = vadd.f32 %v485, %v491
        %v496 = vadd.f32 %v486, %v491
        %v497 = vmax.f32 %v493, 0.0
        %v498 = vmax.f32 %v494, 0.0
        %v499 = vmax.f32 %v495, 0.0
        %v500 = vmax.f32 %v496, 0.0
        %v501 = vcombine.high %v292, %v292
        %v502 = vcombine.high %v293, %v293
        %505 = vrot.lane.b32.xlu0 %v292, 17
        %v506 = vpop.permute.xlu0 %505
        %507 = vrot.lane.b32.xlu0 %v293, 17
        %v508 = vpop.permute.xlu0 %507
        %509 = vrot.lane.b32.xlu0 %v501, 17
        %v510 = vpop.permute.xlu0 %509
        %511 = vrot.lane.b32.xlu0 %v502, 17
        %v512 = vpop.permute.xlu0 %511
        %v513 = vlaneseq
        %v514 = vand.u32 %v513, 127
        %vm515 = vcmp.lt.s32.totalorder %v514, 17
        %v516 = vsel %vm515, %v506, %v510
        %v517 = vsel %vm515, %v508, %v512
        %v518 = vsel %vm515, %v510, %v506
        %v519 = vsel %vm515, %v512, %v508
        %520 = vrot.lane.b32.xlu0 %v497, 17
        %v521 = vpop.permute.xlu0 %520
        %522 = vrot.lane.b32.xlu0 %v499, 17
        %v523 = vpop.permute.xlu0 %522
        %524 = vrot.lane.b32.xlu0 %v498, 17
        %v525 = vpop.permute.xlu0 %524
        %526 = vrot.lane.b32.xlu0 %v500, 17
        %v527 = vpop.permute.xlu0 %526
        %v528 = vsel %vm515, %v521, %v525
        %v529 = vsel %vm515, %v523, %v527
        %v530 = vsel %vm515, %v525, %v521
        %v531 = vsel %vm515, %v527, %v523
        %v532 = vld [vmem:[%s4] sm:$0x3]
        %v534 = vlaneseq
        %v535 = vshrl.u32 %v534, 7
        %v536 = vsub.s32 0, %v535
        %v537 = vrot.slane %v532, %v536
        %v538 = vlaneseq
        %v539 = vshrl.u32 %v538, 7
        %v540 = vsub.s32 1, %v539
        %v541 = vrot.slane %v532, %v540
        %v544 = vmul.f32 %v537, %v518
        %v545 = vmul.f32 %v541, %v516
        %v546 = vmul.f32 %v537, %v519
        %v547 = vmul.f32 %v541, %v517
        %v548 = vld [vmem:[#allocation4] sm:$0xff]
        %v553 = vcombine.low %v530, %v528
        %v554 = vcombine.low %v531, %v529
        %v557 = vmul.f32 %v548, %v553
        %v558 = vmul.f32 %v548, %v554
        %559 = vrot.lane.b32.xlu0 %v292, 16
        %v560 = vpop.permute.xlu0 %559
        %561 = vrot.lane.b32.xlu0 %v293, 16
        %v562 = vpop.permute.xlu0 %561
        %563 = vrot.lane.b32.xlu0 %v501, 16
        %v564 = vpop.permute.xlu0 %563
        %565 = vrot.lane.b32.xlu0 %v502, 16
        %v566 = vpop.permute.xlu0 %565
        %vm567 = vcmp.lt.s32.totalorder %v514, 16
        %v568 = vsel %vm567, %v560, %v564
        %v569 = vsel %vm567, %v562, %v566
        %v570 = vsel %vm567, %v564, %v560
        %v571 = vsel %vm567, %v566, %v562
        %572 = vrot.lane.b32.xlu0 %v497, 16
        %v573 = vpop.permute.xlu0 %572
        %574 = vrot.lane.b32.xlu0 %v499, 16
        %v575 = vpop.permute.xlu0 %574
        %576 = vrot.lane.b32.xlu0 %v498, 16
        %v577 = vpop.permute.xlu0 %576
        %578 = vrot.lane.b32.xlu0 %v500, 16
        %v579 = vpop.permute.xlu0 %578
        %v580 = vsel %vm567, %v573, %v577
        %v581 = vsel %vm567, %v575, %v579
        %v582 = vsel %vm567, %v577, %v573
        %v583 = vsel %vm567, %v579, %v575
        %s584 = scalar_lea.vmem %s4, 2
        %v585 = vld [vmem:[%s584] sm:$0x3]
        %v587 = vlaneseq
        %v588 = vshrl.u32 %v587, 7
        %v589 = vsub.s32 0, %v588
        %v590 = vrot.slane %v585, %v589
        %v591 = vlaneseq
        %v592 = vshrl.u32 %v591, 7
        %v593 = vsub.s32 1, %v592
        %v594 = vrot.slane %v585, %v593
        %v597 = vmul.f32 %v590, %v570
        %v598 = vmul.f32 %v594, %v568
        %v599 = vmul.f32 %v590, %v571
        %v600 = vmul.f32 %v594, %v569
        %s601 = scalar_lea.vmem [#allocation4], 8
        %v602 = vld [vmem:[%s601] sm:$0xff]
        %v607 = vcombine.low %v582, %v580
        %v608 = vcombine.low %v583, %v581
        %v611 = vmul.f32 %v602, %v607
        %v612 = vmul.f32 %v602, %v608
        %v613 = vadd.f32 %v544, %v597
        %v614 = vadd.f32 %v545, %v598
        %v615 = vadd.f32 %v546, %v599
        %v616 = vadd.f32 %v547, %v600
        %v617 = vadd.f32 %v557, %v611
        %v618 = vadd.f32 %v558, %v612
        %619 = vrot.lane.b32.xlu0 %v292, 15
        %v620 = vpop.permute.xlu0 %619
        %621 = vrot.lane.b32.xlu0 %v293, 15
        %v622 = vpop.permute.xlu0 %621
        %623 = vrot.lane.b32.xlu0 %v501, 15
        %v624 = vpop.permute.xlu0 %623
        %625 = vrot.lane.b32.xlu0 %v502, 15
        %v626 = vpop.permute.xlu0 %625
        %vm627 = vcmp.lt.s32.totalorder %v514, 15
        %v628 = vsel %vm627, %v620, %v624
        %v629 = vsel %vm627, %v622, %v626
        %v630 = vsel %vm627, %v624, %v620
        %v631 = vsel %vm627, %v626, %v622
        %632 = vrot.lane.b32.xlu0 %v497, 15
        %v633 = vpop.permute.xlu0 %632
        %634 = vrot.lane.b32.xlu0 %v499, 15
        %v635 = vpop.permute.xlu0 %634
        %636 = vrot.lane.b32.xlu0 %v498, 15
        %v637 = vpop.permute.xlu0 %636
        %638 = vrot.lane.b32.xlu0 %v500, 15
        %v639 = vpop.permute.xlu0 %638
        %v640 = vsel %vm627, %v633, %v637
        %v641 = vsel %vm627, %v635, %v639
        %v642 = vsel %vm627, %v637, %v633
        %v643 = vsel %vm627, %v639, %v635
        %s644 = scalar_lea.vmem %s4, 4
        %v645 = vld [vmem:[%s644] sm:$0x3]
        %v647 = vlaneseq
        %v648 = vshrl.u32 %v647, 7
        %v649 = vsub.s32 0, %v648
        %v650 = vrot.slane %v645, %v649
        %v651 = vlaneseq
        %v652 = vshrl.u32 %v651, 7
        %v653 = vsub.s32 1, %v652
        %v654 = vrot.slane %v645, %v653
        %v657 = vmul.f32 %v650, %v630
        %v658 = vmul.f32 %v654, %v628
        %v659 = vmul.f32 %v650, %v631
        %v660 = vmul.f32 %v654, %v629
        %s661 = scalar_lea.vmem [#allocation4], 16
        %v662 = vld [vmem:[%s661] sm:$0xff]
        %v667 = vcombine.low %v642, %v640
        %v668 = vcombine.low %v643, %v641
        %v671 = vmul.f32 %v662, %v667
        %v672 = vmul.f32 %v662, %v668
        %v673 = vadd.f32 %v613, %v657
        %v674 = vadd.f32 %v614, %v658
        %v675 = vadd.f32 %v615, %v659
        %v676 = vadd.f32 %v616, %v660
        %v677 = vadd.f32 %v617, %v671
        %v678 = vadd.f32 %v618, %v672
        %679 = vrot.lane.b32.xlu0 %v292, 1
        %v680 = vpop.permute.xlu0 %679
        %681 = vrot.lane.b32.xlu0 %v293, 1
        %v682 = vpop.permute.xlu0 %681
        %683 = vrot.lane.b32.xlu0 %v501, 1
        %v684 = vpop.permute.xlu0 %683
        %685 = vrot.lane.b32.xlu0 %v502, 1
        %v686 = vpop.permute.xlu0 %685
        %vm687 = vcmp.lt.s32.totalorder %v514, 1
        %v688 = vsel %vm687, %v680, %v684
        %v689 = vsel %vm687, %v682, %v686
        %v690 = vsel %vm687, %v684, %v680
        %v691 = vsel %vm687, %v686, %v682
        %692 = vrot.lane.b32.xlu0 %v497, 1
        %v693 = vpop.permute.xlu0 %692
        %694 = vrot.lane.b32.xlu0 %v499, 1
        %v695 = vpop.permute.xlu0 %694
        %696 = vrot.lane.b32.xlu0 %v498, 1
        %v697 = vpop.permute.xlu0 %696
        %698 = vrot.lane.b32.xlu0 %v500, 1
        %v699 = vpop.permute.xlu0 %698
        %v700 = vsel %vm687, %v693, %v697
        %v701 = vsel %vm687, %v695, %v699
        %v702 = vsel %vm687, %v697, %v693
        %v703 = vsel %vm687, %v699, %v695
        %s704 = scalar_lea.vmem %s4, 6
        %v705 = vld [vmem:[%s704] sm:$0x3]
        %v707 = vlaneseq
        %v708 = vshrl.u32 %v707, 7
        %v709 = vsub.s32 0, %v708
        %v710 = vrot.slane %v705, %v709
        %v711 = vlaneseq
        %v712 = vshrl.u32 %v711, 7
        %v713 = vsub.s32 1, %v712
        %v714 = vrot.slane %v705, %v713
        %v717 = vmul.f32 %v710, %v690
        %v718 = vmul.f32 %v714, %v688
        %v719 = vmul.f32 %v710, %v691
        %v720 = vmul.f32 %v714, %v689
        %s721 = scalar_lea.vmem [#allocation4], 24
        %v722 = vld [vmem:[%s721] sm:$0xff]
        %v727 = vcombine.low %v702, %v700
        %v728 = vcombine.low %v703, %v701
        %v731 = vmul.f32 %v722, %v727
        %v732 = vmul.f32 %v722, %v728
        %v733 = vadd.f32 %v673, %v717
        %v734 = vadd.f32 %v674, %v718
        %v735 = vadd.f32 %v675, %v719
        %v736 = vadd.f32 %v676, %v720
        %v737 = vadd.f32 %v677, %v731
        %v738 = vadd.f32 %v678, %v732
        %s739 = scalar_lea.vmem %s4, 8
        %v740 = vld [vmem:[%s739] sm:$0x3]
        %v742 = vlaneseq
        %v743 = vshrl.u32 %v742, 7
        %v744 = vsub.s32 0, %v743
        %v745 = vrot.slane %v740, %v744
        %v746 = vlaneseq
        %v747 = vshrl.u32 %v746, 7
        %v748 = vsub.s32 1, %v747
        %v749 = vrot.slane %v740, %v748
        %v752 = vmul.f32 %v745, %v292
        %v753 = vmul.f32 %v749, %v501
        %v754 = vmul.f32 %v745, %v293
        %v755 = vmul.f32 %v749, %v502
        %s756 = scalar_lea.vmem [#allocation4], 32
        %v757 = vld [vmem:[%s756] sm:$0xff]
        %v762 = vcombine.low %v497, %v498
        %v763 = vcombine.low %v499, %v500
        %v766 = vmul.f32 %v757, %v762
        %v767 = vmul.f32 %v757, %v763
        %v768 = vadd.f32 %v733, %v752
        %v769 = vadd.f32 %v734, %v753
        %v770 = vadd.f32 %v735, %v754
        %v771 = vadd.f32 %v736, %v755
        %v772 = vadd.f32 %v737, %v766
        %v773 = vadd.f32 %v738, %v767
        %774 = vrot.lane.b32.xlu0 %v292, 127
        %v775 = vpop.permute.xlu0 %774
        %776 = vrot.lane.b32.xlu0 %v293, 127
        %v777 = vpop.permute.xlu0 %776
        %778 = vrot.lane.b32.xlu0 %v501, 127
        %v779 = vpop.permute.xlu0 %778
        %780 = vrot.lane.b32.xlu0 %v502, 127
        %v781 = vpop.permute.xlu0 %780
        %vm782 = vcmp.lt.s32.totalorder %v514, 127
        %v783 = vsel %vm782, %v775, %v779
        %v784 = vsel %vm782, %v777, %v781
        %v785 = vsel %vm782, %v779, %v775
        %v786 = vsel %vm782, %v781, %v777
        %787 = vrot.lane.b32.xlu0 %v497, 127
        %v788 = vpop.permute.xlu0 %787
        %789 = vrot.lane.b32.xlu0 %v499, 127
        %v790 = vpop.permute.xlu0 %789
        %791 = vrot.lane.b32.xlu0 %v498, 127
        %v792 = vpop.permute.xlu0 %791
        %793 = vrot.lane.b32.xlu0 %v500, 127
        %v794 = vpop.permute.xlu0 %793
        %v795 = vsel %vm782, %v788, %v792
        %v796 = vsel %vm782, %v790, %v794
        %v797 = vsel %vm782, %v792, %v788
        %v798 = vsel %vm782, %v794, %v790
        %s799 = scalar_lea.vmem %s4, 10
        %v800 = vld [vmem:[%s799] sm:$0x3]
        %v802 = vlaneseq
        %v803 = vshrl.u32 %v802, 7
        %v804 = vsub.s32 0, %v803
        %v805 = vrot.slane %v800, %v804
        %v806 = vlaneseq
        %v807 = vshrl.u32 %v806, 7
        %v808 = vsub.s32 1, %v807
        %v809 = vrot.slane %v800, %v808
        %v812 = vmul.f32 %v805, %v783
        %v813 = vmul.f32 %v809, %v785
        %v814 = vmul.f32 %v805, %v784
        %v815 = vmul.f32 %v809, %v786
        %s816 = scalar_lea.vmem [#allocation4], 40
        %v817 = vld [vmem:[%s816] sm:$0xff]
        %v822 = vcombine.low %v795, %v797
        %v823 = vcombine.low %v796, %v798
        %v826 = vmul.f32 %v817, %v822
        %v827 = vmul.f32 %v817, %v823
        %v828 = vadd.f32 %v768, %v812
        %v829 = vadd.f32 %v769, %v813
        %v830 = vadd.f32 %v770, %v814
        %v831 = vadd.f32 %v771, %v815
        %v832 = vadd.f32 %v772, %v826
        %v833 = vadd.f32 %v773, %v827
        %834 = vrot.lane.b32.xlu0 %v292, 113
        %v835 = vpop.permute.xlu0 %834
        %836 = vrot.lane.b32.xlu0 %v293, 113
        %v837 = vpop.permute.xlu0 %836
        %838 = vrot.lane.b32.xlu0 %v501, 113
        %v839 = vpop.permute.xlu0 %838
        %840 = vrot.lane.b32.xlu0 %v502, 113
        %v841 = vpop.permute.xlu0 %840
        %vm842 = vcmp.lt.s32.totalorder %v514, 113
        %v843 = vsel %vm842, %v835, %v839
        %v844 = vsel %vm842, %v837, %v841
        %v845 = vsel %vm842, %v839, %v835
        %v846 = vsel %vm842, %v841, %v837
        %847 = vrot.lane.b32.xlu0 %v497, 113
        %v848 = vpop.permute.xlu0 %847
        %849 = vrot.lane.b32.xlu0 %v499, 113
        %v850 = vpop.permute.xlu0 %849
        %851 = vrot.lane.b32.xlu0 %v498, 113
        %v852 = vpop.permute.xlu0 %851
        %853 = vrot.lane.b32.xlu0 %v500, 113
        %v854 = vpop.permute.xlu0 %853
        %v855 = vsel %vm842, %v848, %v852
        %v856 = vsel %vm842, %v850, %v854
        %v857 = vsel %vm842, %v852, %v848
        %v858 = vsel %vm842, %v854, %v850
        %s859 = scalar_lea.vmem %s4, 12
        %v860 = vld [vmem:[%s859] sm:$0x3]
        %v862 = vlaneseq
        %v863 = vshrl.u32 %v862, 7
        %v864 = vsub.s32 0, %v863
        %v865 = vrot.slane %v860, %v864
        %v866 = vlaneseq
        %v867 = vshrl.u32 %v866, 7
        %v868 = vsub.s32 1, %v867
        %v869 = vrot.slane %v860, %v868
        %v872 = vmul.f32 %v865, %v843
        %v873 = vmul.f32 %v869, %v845
        %v874 = vmul.f32 %v865, %v844
        %v875 = vmul.f32 %v869, %v846
        %s876 = scalar_lea.vmem [#allocation4], 48
        %v877 = vld [vmem:[%s876] sm:$0xff]
        %v882 = vcombine.low %v855, %v857
        %v883 = vcombine.low %v856, %v858
        %v886 = vmul.f32 %v877, %v882
        %v887 = vmul.f32 %v877, %v883
        %v888 = vadd.f32 %v828, %v872
        %v889 = vadd.f32 %v829, %v873
        %v890 = vadd.f32 %v830, %v874
        %v891 = vadd.f32 %v831, %v875
        %v892 = vadd.f32 %v832, %v886
        %v893 = vadd.f32 %v833, %v887
        %894 = vrot.lane.b32.xlu0 %v292, 112
        %v895 = vpop.permute.xlu0 %894
        %896 = vrot.lane.b32.xlu0 %v293, 112
        %v897 = vpop.permute.xlu0 %896
        %898 = vrot.lane.b32.xlu0 %v501, 112
        %v899 = vpop.permute.xlu0 %898
        %900 = vrot.lane.b32.xlu0 %v502, 112
        %v901 = vpop.permute.xlu0 %900
        %vm902 = vcmp.lt.s32.totalorder %v514, 112
        %v903 = vsel %vm902, %v895, %v899
        %v904 = vsel %vm902, %v897, %v901
        %v905 = vsel %vm902, %v899, %v895
        %v906 = vsel %vm902, %v901, %v897
        %907 = vrot.lane.b32.xlu0 %v497, 112
        %v908 = vpop.permute.xlu0 %907
        %909 = vrot.lane.b32.xlu0 %v499, 112
        %v910 = vpop.permute.xlu0 %909
        %911 = vrot.lane.b32.xlu0 %v498, 112
        %v912 = vpop.permute.xlu0 %911
        %913 = vrot.lane.b32.xlu0 %v500, 112
        %v914 = vpop.permute.xlu0 %913
        %v915 = vsel %vm902, %v908, %v912
        %v916 = vsel %vm902, %v910, %v914
        %v917 = vsel %vm902, %v912, %v908
        %v918 = vsel %vm902, %v914, %v910
        %s919 = scalar_lea.vmem %s4, 14
        %v920 = vld [vmem:[%s919] sm:$0x3]
        %v922 = vlaneseq
        %v923 = vshrl.u32 %v922, 7
        %v924 = vsub.s32 0, %v923
        %v925 = vrot.slane %v920, %v924
        %v926 = vlaneseq
        %v927 = vshrl.u32 %v926, 7
        %v928 = vsub.s32 1, %v927
        %v929 = vrot.slane %v920, %v928
        %v932 = vmul.f32 %v925, %v903
        %v933 = vmul.f32 %v929, %v905
        %v934 = vmul.f32 %v925, %v904
        %v935 = vmul.f32 %v929, %v906
        %s936 = scalar_lea.vmem [#allocation4], 56
        %v937 = vld [vmem:[%s936] sm:$0xff]
        %v942 = vcombine.low %v915, %v917
        %v943 = vcombine.low %v916, %v918
        %v946 = vmul.f32 %v937, %v942
        %v947 = vmul.f32 %v937, %v943
        %v948 = vadd.f32 %v888, %v932
        %v949 = vadd.f32 %v889, %v933
        %v950 = vadd.f32 %v890, %v934
        %v951 = vadd.f32 %v891, %v935
        %v952 = vadd.f32 %v892, %v946
        %v953 = vadd.f32 %v893, %v947
        %954 = vrot.lane.b32.xlu0 %v292, 111
        %v955 = vpop.permute.xlu0 %954
        %956 = vrot.lane.b32.xlu0 %v293, 111
        %v957 = vpop.permute.xlu0 %956
        %958 = vrot.lane.b32.xlu0 %v501, 111
        %v959 = vpop.permute.xlu0 %958
        %960 = vrot.lane.b32.xlu0 %v502, 111
        %v961 = vpop.permute.xlu0 %960
        %vm962 = vcmp.lt.s32.totalorder %v514, 111
        %v963 = vsel %vm962, %v955, %v959
        %v964 = vsel %vm962, %v957, %v961
        %v965 = vsel %vm962, %v959, %v955
        %v966 = vsel %vm962, %v961, %v957
        %967 = vrot.lane.b32.xlu0 %v497, 111
        %v968 = vpop.permute.xlu0 %967
        %969 = vrot.lane.b32.xlu0 %v499, 111
        %v970 = vpop.permute.xlu0 %969
        %971 = vrot.lane.b32.xlu0 %v498, 111
        %v972 = vpop.permute.xlu0 %971
        %973 = vrot.lane.b32.xlu0 %v500, 111
        %v974 = vpop.permute.xlu0 %973
        %v975 = vsel %vm962, %v968, %v972
        %v976 = vsel %vm962, %v970, %v974
        %v977 = vsel %vm962, %v972, %v968
        %v978 = vsel %vm962, %v974, %v970
        %s979 = scalar_lea.vmem %s4, 16
        %v980 = vld [vmem:[%s979] sm:$0x3]
        %v982 = vlaneseq
        %v983 = vshrl.u32 %v982, 7
        %v984 = vsub.s32 0, %v983
        %v985 = vrot.slane %v980, %v984
        %v986 = vlaneseq
        %v987 = vshrl.u32 %v986, 7
        %v988 = vsub.s32 1, %v987
        %v989 = vrot.slane %v980, %v988
        %v992 = vmul.f32 %v985, %v963
        %v993 = vmul.f32 %v989, %v965
        %v994 = vmul.f32 %v985, %v964
        %v995 = vmul.f32 %v989, %v966
        %s996 = scalar_lea.vmem [#allocation4], 64
        %v997 = vld [vmem:[%s996] sm:$0xff]
        %v1002 = vcombine.low %v975, %v977
        %v1003 = vcombine.low %v976, %v978
        %v1006 = vmul.f32 %v997, %v1002
        %v1007 = vmul.f32 %v997, %v1003
        %v1008 = vadd.f32 %v948, %v992
        %v1009 = vadd.f32 %v949, %v993
        %v1010 = vadd.f32 %v950, %v994
        %v1011 = vadd.f32 %v951, %v995
        %v1012 = vadd.f32 %v952, %v1006
        %v1013 = vadd.f32 %v953, %v1007
        %1015 = vset.pattern.permute.xlu0 0
        %1016 = vperm.xlu0 %1015, %v295
        %v1017 = vpop.permute.xlu0 %1016
        %v1021 = vlaneseq
        %v1022 = vshrl.u32 %v1021, 7
        %v1023 = vsub.s32 0, %v1022
        %v1024 = vrot.slane %v1012, %v1023
        %v1025 = vlaneseq
        %v1026 = vshrl.u32 %v1025, 7
        %v1027 = vsub.s32 4, %v1026
        %v1028 = vrot.slane %v1012, %v1027
        %v1029 = vlaneseq
        %v1030 = vshrl.u32 %v1029, 7
        %v1031 = vsub.s32 0, %v1030
        %v1032 = vrot.slane %v1013, %v1031
        %v1033 = vlaneseq
        %v1034 = vshrl.u32 %v1033, 7
        %v1035 = vsub.s32 4, %v1034
        %v1036 = vrot.slane %v1013, %v1035
        %v1041 = vlaneseq
        %v1042 = vshrl.u32 %v1041, 7
        %v1043 = vsub.s32 0, %v1042
        %v1044 = vrot.slane %v1024, %v1043
        %v1045 = vlaneseq
        %v1046 = vshrl.u32 %v1045, 7
        %v1047 = vsub.s32 0, %v1046
        %v1048 = vrot.slane %v1028, %v1047
        %v1049 = vlaneseq
        %v1050 = vshrl.u32 %v1049, 7
        %v1051 = vsub.s32 0, %v1050
        %v1052 = vrot.slane %v1032, %v1051
        %v1053 = vlaneseq
        %v1054 = vshrl.u32 %v1053, 7
        %v1055 = vsub.s32 0, %v1054
        %v1056 = vrot.slane %v1036, %v1055
        %v1057 = vmul.f32 %v1017, %v1044
        %v1058 = vmul.f32 %v1017, %v1048
        %v1059 = vmul.f32 %v1017, %v1052
        %v1060 = vmul.f32 %v1017, %v1056
        %1061 = vset.pattern.permute.xlu0 1
        %1062 = vperm.xlu0 %1061, %v295
        %v1063 = vpop.permute.xlu0 %1062
        %v1065 = vlaneseq
        %v1066 = vshrl.u32 %v1065, 7
        %v1067 = vsub.s32 1, %v1066
        %v1068 = vrot.slane %v1012, %v1067
        %v1069 = vlaneseq
        %v1070 = vshrl.u32 %v1069, 7
        %v1071 = vsub.s32 5, %v1070
        %v1072 = vrot.slane %v1012, %v1071
        %v1073 = vlaneseq
        %v1074 = vshrl.u32 %v1073, 7
        %v1075 = vsub.s32 1, %v1074
        %v1076 = vrot.slane %v1013, %v1075
        %v1077 = vlaneseq
        %v1078 = vshrl.u32 %v1077, 7
        %v1079 = vsub.s32 5, %v1078
        %v1080 = vrot.slane %v1013, %v1079
        %v1085 = vlaneseq
        %v1086 = vshrl.u32 %v1085, 7
        %v1087 = vsub.s32 1, %v1086
        %v1088 = vrot.slane %v1068, %v1087
        %v1089 = vlaneseq
        %v1090 = vshrl.u32 %v1089, 7
        %v1091 = vsub.s32 1, %v1090
        %v1092 = vrot.slane %v1072, %v1091
        %v1093 = vlaneseq
        %v1094 = vshrl.u32 %v1093, 7
        %v1095 = vsub.s32 1, %v1094
        %v1096 = vrot.slane %v1076, %v1095
        %v1097 = vlaneseq
        %v1098 = vshrl.u32 %v1097, 7
        %v1099 = vsub.s32 1, %v1098
        %v1100 = vrot.slane %v1080, %v1099
        %v1101 = vmul.f32 %v1063, %v1088
        %v1102 = vmul.f32 %v1063, %v1092
        %v1103 = vmul.f32 %v1063, %v1096
        %v1104 = vmul.f32 %v1063, %v1100
        %v1105 = vadd.f32 %v1057, %v1101
        %v1106 = vadd.f32 %v1058, %v1102
        %v1107 = vadd.f32 %v1059, %v1103
        %v1108 = vadd.f32 %v1060, %v1104
        %1109 = vset.pattern.permute.xlu0 2
        %1110 = vperm.xlu0 %1109, %v295
        %v1111 = vpop.permute.xlu0 %1110
        %v1113 = vlaneseq
        %v1114 = vshrl.u32 %v1113, 7
        %v1115 = vsub.s32 2, %v1114
        %v1116 = vrot.slane %v1012, %v1115
        %v1117 = vlaneseq
        %v1118 = vshrl.u32 %v1117, 7
        %v1119 = vsub.s32 6, %v1118
        %v1120 = vrot.slane %v1012, %v1119
        %v1121 = vlaneseq
        %v1122 = vshrl.u32 %v1121, 7
        %v1123 = vsub.s32 2, %v1122
        %v1124 = vrot.slane %v1013, %v1123
        %v1125 = vlaneseq
        %v1126 = vshrl.u32 %v1125, 7
        %v1127 = vsub.s32 6, %v1126
        %v1128 = vrot.slane %v1013, %v1127
        %v1133 = vlaneseq
        %v1134 = vshrl.u32 %v1133, 7
        %v1135 = vsub.s32 2, %v1134
        %v1136 = vrot.slane %v1116, %v1135
        %v1137 = vlaneseq
        %v1138 = vshrl.u32 %v1137, 7
        %v1139 = vsub.s32 2, %v1138
        %v1140 = vrot.slane %v1120, %v1139
        %v1141 = vlaneseq
        %v1142 = vshrl.u32 %v1141, 7
        %v1143 = vsub.s32 2, %v1142
        %v1144 = vrot.slane %v1124, %v1143
        %v1145 = vlaneseq
        %v1146 = vshrl.u32 %v1145, 7
        %v1147 = vsub.s32 2, %v1146
        %v1148 = vrot.slane %v1128, %v1147
        %v1149 = vmul.f32 %v1111, %v1136
        %v1150 = vmul.f32 %v1111, %v1140
        %v1151 = vmul.f32 %v1111, %v1144
        %v1152 = vmul.f32 %v1111, %v1148
        %v1153 = vadd.f32 %v1105, %v1149
        %v1154 = vadd.f32 %v1106, %v1150
        %v1155 = vadd.f32 %v1107, %v1151
        %v1156 = vadd.f32 %v1108, %v1152
        %1157 = vset.pattern.permute.xlu0 3
        %1158 = vperm.xlu0 %1157, %v295
        %v1159 = vpop.permute.xlu0 %1158
        %v1161 = vlaneseq
        %v1162 = vshrl.u32 %v1161, 7
        %v1163 = vsub.s32 3, %v1162
        %v1164 = vrot.slane %v1012, %v1163
        %v1165 = vlaneseq
        %v1166 = vshrl.u32 %v1165, 7
        %v1167 = vsub.s32 7, %v1166
        %v1168 = vrot.slane %v1012, %v1167
        %v1169 = vlaneseq
        %v1170 = vshrl.u32 %v1169, 7
        %v1171 = vsub.s32 3, %v1170
        %v1172 = vrot.slane %v1013, %v1171
        %v1173 = vlaneseq
        %v1174 = vshrl.u32 %v1173, 7
        %v1175 = vsub.s32 7, %v1174
        %v1176 = vrot.slane %v1013, %v1175
        %v1181 = vlaneseq
        %v1182 = vshrl.u32 %v1181, 7
        %v1183 = vsub.s32 3, %v1182
        %v1184 = vrot.slane %v1164, %v1183
        %v1185 = vlaneseq
        %v1186 = vshrl.u32 %v1185, 7
        %v1187 = vsub.s32 3, %v1186
        %v1188 = vrot.slane %v1168, %v1187
        %v1189 = vlaneseq
        %v1190 = vshrl.u32 %v1189, 7
        %v1191 = vsub.s32 3, %v1190
        %v1192 = vrot.slane %v1172, %v1191
        %v1193 = vlaneseq
        %v1194 = vshrl.u32 %v1193, 7
        %v1195 = vsub.s32 3, %v1194
        %v1196 = vrot.slane %v1176, %v1195
        %v1197 = vmul.f32 %v1159, %v1184
        %v1198 = vmul.f32 %v1159, %v1188
        %v1199 = vmul.f32 %v1159, %v1192
        %v1200 = vmul.f32 %v1159, %v1196
        %v1201 = vadd.f32 %v1153, %v1197
        %v1202 = vadd.f32 %v1154, %v1198
        %v1203 = vadd.f32 %v1155, %v1199
        %v1204 = vadd.f32 %v1156, %v1200
        %v1205 = vld [vmem:[%s3 + $0x4] sm:$0xff]
        %1207 = vset.pattern.permute.xlu0 0
        %1208 = vperm.xlu0 %1207, %v1205
        %v1209 = vpop.permute.xlu0 %1208
        %v1211 = vadd.f32 %v1201, %v1209
        %v1212 = vadd.f32 %v1202, %v1209
        %v1213 = vadd.f32 %v1203, %v1209
        %v1214 = vadd.f32 %v1204, %v1209
        %v1215 = vmax.f32 %v1008, 0.0
        %v1216 = vmax.f32 %v1009, 0.0
        %v1217 = vmax.f32 %v1010, 0.0
        %v1218 = vmax.f32 %v1011, 0.0
        %1219 = vst [vmem:[%s290] sm:$0xf] %v1215
        %1220 = vst [vmem:[%s290 + $0x8] sm:$0xf] %v1216
        %1221 = vst [vmem:[%s290 + $0x20] sm:$0xf] %v1217
        %1222 = vst [vmem:[%s290 + $0x28] sm:$0xf] %v1218
        %v1223 = vmax.f32 %v1211, 0.0
        %v1224 = vmax.f32 %v1212, 0.0
        %v1225 = vmax.f32 %v1213, 0.0
        %v1226 = vmax.f32 %v1214, 0.0
        %v1231 = vrot.slane %v1223, 4
        %v1232 = vrot.slane %v1224, 4
        %v1233 = vrot.slane %v1225, 4
        %v1234 = vrot.slane %v1226, 4
        %1239 = vst [vmem:[%s290] sm:$0xf0] %v1231
        %1240 = vst [vmem:[%s290 + $0x8] sm:$0xf0] %v1232
        %1241 = vst [vmem:[%s290 + $0x10] sm:$0xf] %v1231
        %1242 = vst [vmem:[%s290 + $0x18] sm:$0xf] %v1232
        %1243 = vst [vmem:[%s290 + $0x20] sm:$0xf0] %v1233
        %1244 = vst [vmem:[%s290 + $0x28] sm:$0xf0] %v1234
        %1245 = vst [vmem:[%s290 + $0x30] sm:$0xf] %v1233
        %1246 = vst [vmem:[%s290 + $0x38] sm:$0xf] %v1234
        %s1247 = smul.u32 2, %s21
        %p1248 = scmp.lt.s32.totalorder %s1247, 3
        %s1249 = scalar_select %p1248, %s1247, 3
        %s1250 = smul.addr %s1249, 4
        %s1251 = smul.addr %s1250, 8
        %s1252 = scalar_lea.vmem %s6, %s1251
        // Predicated region
        $region53: #{tpu_custom_call.1} parent=43 // pred_check
          %p1253 = pneg %p170
        $region54: #{tpu_custom_call.1} parent=43 // pred_check_branch
          %1255 = sbr.rel (%p1253) target = $region56
        $region55: #{tpu_custom_call.1} parent=43 // pred_region
          %s1256 = smul.u32 2, %s21
        $region56: #{tpu_custom_call.1} parent=43 // pred_fallthru
          _
      $region44: #{tpu_custom_call.1} parent=5 // pred_fallthru
        _
      %p1257 = scmp.le.s32.totalorder 2, %s16
      // Predicated region
      $region57: #{tpu_custom_call.1} parent=5 // pred_check
        %p1258 = pneg %p1257
      $region58: #{tpu_custom_call.1} parent=5 // pred_check_branch
        %1260 = sbr.rel (%p1258) target = $region60
      $region59: #{tpu_custom_call.1} parent=5 // pred_region
        %s1261 = ssub.s32 %s16, 2
        // Predicated region
        $region61: #{tpu_custom_call.1} parent=59 // pred_check
          %p1262 = pneg %p176
        $region62: #{tpu_custom_call.1} parent=59 // pred_check_branch
          %1264 = sbr.rel (%p1262) target = $region64
        $region63: #{tpu_custom_call.1} parent=59 // pred_region
          %s1265 = smul.u32 2, %s22
          %p1266 = scmp.lt.s32.totalorder %s1265, 3
          %s1267 = scalar_select %p1266, %s1265, 3
          %s1268 = smul.addr %s1267, 4
          %s1269 = smul.addr %s1268, 8
          %s1270 = scalar_lea.vmem %s6, %s1269
        $region64: #{tpu_custom_call.1} parent=59 // pred_fallthru
          _
      $region60: #{tpu_custom_call.1} parent=5 // pred_fallthru
        _
    $region6: #{tpu_custom_call.1} parent=1 // loop_footer
      %s20 = sadd.s32 1, %s16
    $region7: #{tpu_custom_call.1} parent=1 // loop_footer_branch
      %15 = sbr.rel target = $region3
    $region8: #{tpu_custom_call.1} parent=1 // loop_exit
      _
    %1271 = vsyncpa [#allocation3], 1
    %s1272 = scalar_lea.sflag [#allocation3], 1
    %1273 = vsyncpa %s1272, 1
    %1274 = vsyncpa [#allocation5], 1

</llo_original>
